<compile_context>
chip_gen: v7x
topology: tpu7x:2x2x1
jax: 0.10.0
libtpu: 0.0.40
codegen_flags: <defaults>
</compile_context>

<pallas_src>
import jax
import jax.numpy as jnp
from jax.experimental import pallas as pl
from jax.experimental.pallas import tpu as pltpu

# ---------------------------------------------------------------------------
# Model hyper-parameters (small, consistent with the module's __init__).
# ---------------------------------------------------------------------------
B = 2                  # logical batch
BP = 8                 # padded batch (full 8-sublane f32 tile)
C_IN = 3               # image channels (NCHW)
IMG_HW = 16            # spatial size
IMG_PIX = IMG_HW * IMG_HW            # 256
IMG_FLAT = C_IN * IMG_PIX            # 768
IN_FEATURES = 64       # backbone output dim (stand-in for ResNeSt-50's 2048)
EMBED_SIZE = 64        # feature_size / embed_size
QST_VOCAB = 50
WORD_EMBED = 32        # qst_embed_size
NUM_LAYERS = 2
HIDDEN = 32            # LSTM hidden_size
ANS_VOCAB = 16
SEQ_LEN = 8

H2 = 2 * HIDDEN        # 64  : packed state width  [layer0 | layer1]
G2 = 8 * HIDDEN        # 256 : packed gate width   [i0|i1|f0|f1|g0|g1|o0|o1]
OUT_PAD = 128          # lane-dense final store, sliced to ANS_VOCAB in glue

# pack_a (256-lane slab) row offsets: LSTM projection / recurrence / bias
A_WIH0 = 0                           # [WORD_EMBED, G2]  layer-0 input proj
A_WREC = 32                          # [H2, G2]          block-diag recurrence
A_BIAS = 96                          # [1, G2]           b_l0 (+) b_l1, packed
A_ROWS = 104

# pack_b (64-lane slab) row offsets: image path + qst_fc
B_WBB = 0                            # [IMG_FLAT, IN_FEATURES]  GAP folded in
B_WIFC = B_WBB + IMG_FLAT            # [IN_FEATURES, EMBED]
B_WQH = B_WIFC + IN_FEATURES         # [H2, EMBED]  qst_fc rows for (h0, h1)
B_WQC = B_WQH + H2                   # [H2, EMBED]  qst_fc rows for (c0, c1)
B_BBB = B_WQC + H2                   # [1, ...] backbone-proxy bias
B_BIFC = B_BBB + 8                   # [1, ...] img fc bias
B_BQ = B_BIFC + 8                    # [1, ...] qst fc bias
B_ROWS = B_BQ + 8

# pack_c (128-lane slab) row offsets: fusion head
C_W1 = 0                             # [EMBED, OUT_PAD]
C_W2 = C_W1 + EMBED_SIZE             # [OUT_PAD, OUT_PAD]
C_B1 = C_W2 + OUT_PAD                # [1, OUT_PAD]
C_B2 = C_B1 + 8                      # [1, OUT_PAD]
C_ROWS = C_B2 + 8

_VMEM = pl.BlockSpec(memory_space=pltpu.MemorySpace.VMEM)


# ---------------------------------------------------------------------------
# Fused kernel: ImgEncoder + QstEncoder (wavefront 2-layer LSTM) + fusion head.
# ---------------------------------------------------------------------------
def vqa_fused_kernel(img_ref, xemb_ref, pa_ref, pb_ref, pc_ref, out_ref):
    f32 = jnp.float32

    # ---- ImgEncoder: GAP backbone proxy -> fc --------------------------------
    # GAP's 1/(H*W) and the channel replication are folded into the expanded
    # proxy weight, so the whole image path is two lane-dense matmuls.
    feat = (jnp.dot(img_ref[...], pb_ref[B_WBB:B_WBB + IMG_FLAT, :],
                    preferred_element_type=f32)
            + pb_ref[B_BBB:B_BBB + 1, :])                          # [BP, IN_FEAT]
    img_feat = (jnp.dot(feat, pb_ref[B_WIFC:B_WIFC + IN_FEATURES, :],
                        preferred_element_type=f32)
                + pb_ref[B_BIFC:B_BIFC + 1, :])                    # [BP, EMBED]

    # ---- QstEncoder: tanh(embed) -> 2-layer LSTM (wavefront) -> fc -----------
    x = jnp.tanh(xemb_ref[...])                                    # [T*BP, E]
    bias_row = pa_ref[A_BIAS:A_BIAS + 1, :]                        # [1, G2]
    # Layer-0 input projection for ALL timesteps in one matmul; the packed bias
    # row carries b_l0 in the layer-0 gate columns and b_l1 in the layer-1 ones,
    # so a single per-step add feeds both halves of the packed gate matmul.
    xb = (jnp.dot(x, pa_ref[A_WIH0:A_WIH0 + WORD_EMBED, :],
                  preferred_element_type=f32)
          + bias_row)                                              # [T*BP, G2]
    w_rec = pa_ref[A_WREC:A_WREC + H2, :]                          # [H2, G2]

    # Wavefront: at step s, lanes [0,H) of the packed state advance layer-0 to
    # time s while lanes [H,2H) advance layer-1 to time s-1, via ONE
    # block-diagonal [BP,2H]@[2H,8H] matmul.  sigmoid(z) = 0.5*tanh(z/2)+0.5
    # with the 0.5 pre-folded into the i/f/o columns at init, so each step
    # needs a single tanh(gates) EUP pass (plus tanh(c)).
    hc = jnp.zeros((BP, H2), f32)
    cc = jnp.zeros((BP, H2), f32)
    lane = jax.lax.broadcasted_iota(jnp.int32, (1, H2), 1)
    m_l0 = jnp.where(lane < HIDDEN, 1.0, 0.0).astype(f32)          # layer-0 lanes
    m_l1 = 1.0 - m_l0                                              # layer-1 lanes

    for s in range(SEQ_LEN + 1):                                   # static unroll
        # Step SEQ_LEN only advances layer-1; its layer-0 half is discarded,
        # so bias-only input is fine there.
        xs = xb[s * BP:(s + 1) * BP, :] if s < SEQ_LEN else bias_row
        gates = jnp.dot(hc, w_rec, preferred_element_type=f32) + xs  # [BP, G2]
        t = jnp.tanh(gates)                                        # ONE EUP pass
        i_g = 0.5 * t[:, 0 * H2:1 * H2] + 0.5                      # sigmoid(i0|i1)
        f_g = 0.5 * t[:, 1 * H2:2 * H2] + 0.5                      # sigmoid(f0|f1)
        g_g = t[:, 2 * H2:3 * H2]                                  # tanh   (g0|g1)
        o_g = 0.5 * t[:, 3 * H2:4 * H2] + 0.5                      # sigmoid(o0|o1)
        cc_new = f_g * cc + i_g * g_g
        hc_new = o_g * jnp.tanh(cc_new)
        if s == 0:                      # layer-1 is still at time -1: keep zeros
            cc_new = cc_new * m_l0
            hc_new = hc_new * m_l0
        if s == SEQ_LEN:                # last step: freeze layer-0 at time T-1
            cc_new = cc * m_l0 + cc_new * m_l1
            hc_new = hc * m_l0 + hc_new * m_l1
        cc, hc = cc_new, hc_new

    # tanh(cat([h0, c0, h1, c1])) @ Wq + bq.  Wq's rows were pre-gathered into
    # an h-block and a c-block matching the packed [layer0 | layer1] state, so
    # no lane-axis concatenation is needed.
    qst_feat = (jnp.dot(jnp.tanh(hc), pb_ref[B_WQH:B_WQH + H2, :],
                        preferred_element_type=f32)
                + jnp.dot(jnp.tanh(cc), pb_ref[B_WQC:B_WQC + H2, :],
                          preferred_element_type=f32)
                + pb_ref[B_BQ:B_BQ + 1, :])                        # [BP, EMBED]

    # ---- Fusion head: mul -> tanh -> [dropout=id] -> fc1 -> tanh -> fc2 ------
    fused = jnp.tanh(img_feat * qst_feat)
    y = jnp.tanh(jnp.dot(fused, pc_ref[C_W1:C_W1 + EMBED_SIZE, :],
                         preferred_element_type=f32)
                 + pc_ref[C_B1:C_B1 + 1, :])                       # [BP, 128]
    out_ref[...] = (jnp.dot(y, pc_ref[C_W2:C_W2 + OUT_PAD, :],
                            preferred_element_type=f32)
                    + pc_ref[C_B2:C_B2 + 1, :])                    # [BP, 128]


# ---------------------------------------------------------------------------
# Parameter init (deterministic).  Raw params mirror the PyTorch layout
# (x @ W form); packed params are pre-laid-out / pre-scaled for the kernel.
# ---------------------------------------------------------------------------
def _gate_cols(w4h, layer):
    """Scatter a [*, 4H] (i|f|g|o) weight/bias into the packed [*, 8H] layout
    [i0|i1|f0|f1|g0|g1|o0|o1], applying the 0.5 sigmoid pre-scale to i/f/o."""
    out = jnp.zeros(w4h.shape[:-1] + (G2,), jnp.float32)
    for gi, scale in enumerate((0.5, 0.5, 1.0, 0.5)):   # i, f, g, o
        blk = w4h[..., gi * HIDDEN:(gi + 1) * HIDDEN] * scale
        col = (2 * gi + layer) * HIDDEN
        out = out.at[..., col:col + HIDDEN].set(blk)
    return out


def init_params(key):
    s = 0.1
    keys = list(jax.random.split(key, 17))

    def nrm(shape):
        return s * jax.random.normal(keys.pop(0), shape, jnp.float32)

    raw = {}
    # ImgEncoder: backbone proxy (GAP -> linear, C_IN -> IN_FEATURES) + fc
    raw["w_bb"] = nrm((C_IN, IN_FEATURES))
    raw["b_bb"] = nrm((IN_FEATURES,))
    raw["w_ifc"] = nrm((IN_FEATURES, EMBED_SIZE))
    raw["b_ifc"] = nrm((EMBED_SIZE,))
    # QstEncoder: embedding + 2-layer LSTM (gate order i|f|g|o) + fc
    raw["embedding"] = nrm((QST_VOCAB, WORD_EMBED))
    raw["w_ih0"] = nrm((WORD_EMBED, 4 * HIDDEN))
    raw["w_hh0"] = nrm((HIDDEN, 4 * HIDDEN))
    raw["b_l0"] = nrm((4 * HIDDEN,))                 # b_ih + b_hh combined
    raw["w_ih1"] = nrm((HIDDEN, 4 * HIDDEN))
    raw["w_hh1"] = nrm((HIDDEN, 4 * HIDDEN))
    raw["b_l1"] = nrm((4 * HIDDEN,))
    raw["w_qfc"] = nrm((2 * NUM_LAYERS * HIDDEN, EMBED_SIZE))  # rows: h0,c0,h1,c1
    raw["b_qfc"] = nrm((EMBED_SIZE,))
    # Fusion head
    raw["w_fc1"] = nrm((EMBED_SIZE, ANS_VOCAB))
    raw["b_fc1"] = nrm((ANS_VOCAB,))
    raw["w_fc2"] = nrm((ANS_VOCAB, ANS_VOCAB))
    raw["b_fc2"] = nrm((ANS_VOCAB,))

    # ---- pack_a: LSTM input proj + block-diagonal recurrence + packed bias ---
    wih0_p = _gate_cols(raw["w_ih0"], 0)                            # [E, G2]
    w_rec = jnp.zeros((H2, G2), jnp.float32)
    w_rec = w_rec.at[0:HIDDEN, :].set(
        _gate_cols(raw["w_hh0"], 0) + _gate_cols(raw["w_ih1"], 1))  # h0 rows
    w_rec = w_rec.at[HIDDEN:H2, :].set(_gate_cols(raw["w_hh1"], 1)) # h1 rows
    b_pack = _gate_cols(raw["b_l0"], 0) + _gate_cols(raw["b_l1"], 1)

    pack_a = jnp.zeros((A_ROWS, G2), jnp.float32)
    pack_a = pack_a.at[A_WIH0:A_WIH0 + WORD_EMBED, :].set(wih0_p)
    pack_a = pack_a.at[A_WREC:A_WREC + H2, :].set(w_rec)
    pack_a = pack_a.at[A_BIAS, :].set(b_pack)

    # ---- pack_b: image path (GAP folded) + qst_fc (row-gathered) + biases ----
    w_bb_exp = jnp.repeat(raw["w_bb"], IMG_PIX, axis=0) / float(IMG_PIX)
    wq = raw["w_qfc"]
    wq_h = jnp.concatenate([wq[0:HIDDEN], wq[2 * HIDDEN:3 * HIDDEN]], axis=0)
    wq_c = jnp.concatenate([wq[HIDDEN:2 * HIDDEN], wq[3 * HIDDEN:]], axis=0)

    pack_b = jnp.zeros((B_ROWS, EMBED_SIZE), jnp.float32)   # IN_FEATURES==EMBED
    pack_b = pack_b.at[B_WBB:B_WBB + IMG_FLAT, :].set(w_bb_exp)
    pack_b = pack_b.at[B_WIFC:B_WIFC + IN_FEATURES, :].set(raw["w_ifc"])
    pack_b = pack_b.at[B_WQH:B_WQH + H2, :].set(wq_h)
    pack_b = pack_b.at[B_WQC:B_WQC + H2, :].set(wq_c)
    pack_b = pack_b.at[B_BBB, :].set(raw["b_bb"])
    pack_b = pack_b.at[B_BIFC, :].set(raw["b_ifc"])
    pack_b = pack_b.at[B_BQ, :].set(raw["b_qfc"])

    # ---- pack_c: fusion head, output lanes zero-padded to 128 ---------------
    pack_c = jnp.zeros((C_ROWS, OUT_PAD), jnp.float32)
    pack_c = pack_c.at[C_W1:C_W1 + EMBED_SIZE, :ANS_VOCAB].set(raw["w_fc1"])
    pack_c = pack_c.at[C_W2:C_W2 + ANS_VOCAB, :ANS_VOCAB].set(raw["w_fc2"])
    pack_c = pack_c.at[C_B1, :ANS_VOCAB].set(raw["b_fc1"])
    pack_c = pack_c.at[C_B2, :ANS_VOCAB].set(raw["b_fc2"])

    params = {"embedding": raw["embedding"], "pack_a": pack_a,
              "pack_b": pack_b, "pack_c": pack_c}
    return params, raw


# ---------------------------------------------------------------------------
# Forward: one fused pallas_call; embedding gather + batch pad + slice = glue.
# ---------------------------------------------------------------------------
@jax.jit
def vqa_forward(image, question, params):
    b = image.shape[0]
    pad = BP - b
    img = jnp.pad(image, ((0, pad), (0, 0), (0, 0), (0, 0)))
    qst = jnp.pad(question, ((0, pad), (0, 0)))
    img_flat = img.reshape(BP, IMG_FLAT)                           # spatial -> lanes
    x_emb = jnp.take(params["embedding"], qst, axis=0)             # [BP, T, E]
    x_emb = jnp.transpose(x_emb, (1, 0, 2)).reshape(SEQ_LEN * BP, WORD_EMBED)

    out_pad = pl.pallas_call(
        vqa_fused_kernel,
        out_shape=jax.ShapeDtypeStruct((BP, OUT_PAD), jnp.float32),
        in_specs=[_VMEM] * 5,
        out_specs=_VMEM,
    )(img_flat, x_emb, params["pack_a"], params["pack_b"], params["pack_c"])

    return out_pad[:b, :ANS_VOCAB]                                 # [B, ANS_VOCAB]


# ---------------------------------------------------------------------------
# Pure-JAX reference of the same forward semantics (for a runtime check).
# ---------------------------------------------------------------------------
def reference_forward(image, question, raw):
    # ImgEncoder (backbone proxy = GAP -> linear), then fc.
    pooled = jnp.mean(image.reshape(image.shape[0], C_IN, IMG_PIX), axis=-1)
    feat = pooled @ raw["w_bb"] + raw["b_bb"]
    img_feat = feat @ raw["w_ifc"] + raw["b_ifc"]

    # QstEncoder: embed -> tanh -> 2-layer LSTM -> tanh(cat) -> fc
    x = jnp.tanh(jnp.take(raw["embedding"], question, axis=0))     # [B, T, E]
    x = jnp.transpose(x, (1, 0, 2))                                # [T, B, E]

    def lstm_layer(xs, w_ih, w_hh, bias):
        n = xs.shape[1]
        h = jnp.zeros((n, HIDDEN), jnp.float32)
        c = jnp.zeros((n, HIDDEN), jnp.float32)
        hs = []
        for t in range(xs.shape[0]):
            z = xs[t] @ w_ih + h @ w_hh + bias
            i = jax.nn.sigmoid(z[:, 0:HIDDEN])
            f = jax.nn.sigmoid(z[:, HIDDEN:2 * HIDDEN])
            g = jnp.tanh(z[:, 2 * HIDDEN:3 * HIDDEN])
            o = jax.nn.sigmoid(z[:, 3 * HIDDEN:4 * HIDDEN])
            c = f * c + i * g
            h = o * jnp.tanh(c)
            hs.append(h)
        return jnp.stack(hs), h, c

    h0s, h0, c0 = lstm_layer(x, raw["w_ih0"], raw["w_hh0"], raw["b_l0"])
    _, h1, c1 = lstm_layer(h0s, raw["w_ih1"], raw["w_hh1"], raw["b_l1"])
    qcat = jnp.concatenate([h0, c0, h1, c1], axis=1)               # [B, 2*L*H]
    qst_feat = jnp.tanh(qcat) @ raw["w_qfc"] + raw["b_qfc"]

    fused = jnp.tanh(img_feat * qst_feat)                          # dropout = id
    y = jnp.tanh(fused @ raw["w_fc1"] + raw["b_fc1"])
    return y @ raw["w_fc2"] + raw["b_fc2"]


if __name__ == "__main__":
    key = jax.random.PRNGKey(0)
    k_img, k_qst, k_par = jax.random.split(key, 3)

    image = jax.random.normal(k_img, (B, C_IN, IMG_HW, IMG_HW), jnp.float32)  # NCHW
    question = jax.random.randint(k_qst, (B, SEQ_LEN), 0, QST_VOCAB, jnp.int32)
    params, raw = init_params(k_par)

    out = vqa_forward(image, question, params)
    out = jax.block_until_ready(out)
    assert out.shape == (B, ANS_VOCAB), out.shape
    assert bool(jnp.all(jnp.isfinite(out)))

    ref = reference_forward(image, question, raw)
    max_diff = float(jnp.max(jnp.abs(out - ref)))
    assert bool(jnp.allclose(out, ref, atol=5e-3, rtol=5e-3)), max_diff

    print("KERNEL_OK")
</pallas_src>

<mosaic_0001>
module attributes {stable_mosaic.version = 11 : i64} {
  func.func @vqa_fused_kernel(%arg0: memref<8x768xf32, #tpu.memory_space<vmem>>, %arg1: memref<64x32xf32, #tpu.memory_space<vmem>>, %arg2: memref<104x256xf32, #tpu.memory_space<vmem>>, %arg3: memref<984x64xf32, #tpu.memory_space<vmem>>, %arg4: memref<208x128xf32, #tpu.memory_space<vmem>>, %arg5: memref<8x128xf32, #tpu.memory_space<vmem>>) attributes {dimension_semantics = [], scalar_prefetch = 0 : i64, scratch_operands = 0 : i64, tpu.core_type = #tpu.core_type<tc>} {
    %c0 = arith.constant 0 : index
    %c0_0 = arith.constant 0 : index
    %0 = vector.load %arg0[%c0, %c0_0] : memref<8x768xf32, #tpu.memory_space<vmem>>, vector<8x768xf32>
    %c0_1 = arith.constant 0 : index
    %c0_2 = arith.constant 0 : index
    %1 = vector.load %arg3[%c0_1, %c0_2] : memref<984x64xf32, #tpu.memory_space<vmem>>, vector<768x64xf32>
    %cst = arith.constant dense<0.000000e+00> : vector<8x64xf32>
    %2 = tpu.matmul %0, %1, %cst {dimension_numbers = #tpu.dot_dimension_numbers<[1], [0], [0], [1], [0, 0, 1, 1], [], []>} : vector<8x768xf32>, vector<768x64xf32>, vector<8x64xf32> -> vector<8x64xf32>
    %c960 = arith.constant 960 : index
    %c0_3 = arith.constant 0 : index
    %3 = vector.load %arg3[%c960, %c0_3] : memref<984x64xf32, #tpu.memory_space<vmem>>, vector<1x64xf32>
    %4 = vector.broadcast %3 : vector<1x64xf32> to vector<8x64xf32>
    %5 = arith.addf %2, %4 : vector<8x64xf32>
    %c768 = arith.constant 768 : index
    %c0_4 = arith.constant 0 : index
    %6 = vector.load %arg3[%c768, %c0_4] : memref<984x64xf32, #tpu.memory_space<vmem>>, vector<64x64xf32>
    %cst_5 = arith.constant dense<0.000000e+00> : vector<8x64xf32>
    %7 = tpu.matmul %5, %6, %cst_5 {dimension_numbers = #tpu.dot_dimension_numbers<[1], [0], [0], [1], [0, 0, 1, 1], [], []>} : vector<8x64xf32>, vector<64x64xf32>, vector<8x64xf32> -> vector<8x64xf32>
    %c968 = arith.constant 968 : index
    %c0_6 = arith.constant 0 : index
    %8 = vector.load %arg3[%c968, %c0_6] : memref<984x64xf32, #tpu.memory_space<vmem>>, vector<1x64xf32>
    %9 = vector.broadcast %8 : vector<1x64xf32> to vector<8x64xf32>
    %10 = arith.addf %7, %9 : vector<8x64xf32>
    %c0_7 = arith.constant 0 : index
    %c0_8 = arith.constant 0 : index
    %11 = vector.load %arg1[%c0_7, %c0_8] : memref<64x32xf32, #tpu.memory_space<vmem>>, vector<64x32xf32>
    %12 = math.tanh %11 : vector<64x32xf32>
    %c96 = arith.constant 96 : index
    %c0_9 = arith.constant 0 : index
    %13 = vector.load %arg2[%c96, %c0_9] : memref<104x256xf32, #tpu.memory_space<vmem>>, vector<1x256xf32>
    %c0_10 = arith.constant 0 : index
    %c0_11 = arith.constant 0 : index
    %14 = vector.load %arg2[%c0_10, %c0_11] : memref<104x256xf32, #tpu.memory_space<vmem>>, vector<32x256xf32>
    %cst_12 = arith.constant dense<0.000000e+00> : vector<64x256xf32>
    %15 = tpu.matmul %12, %14, %cst_12 {dimension_numbers = #tpu.dot_dimension_numbers<[1], [0], [0], [1], [0, 0, 1, 1], [], []>} : vector<64x32xf32>, vector<32x256xf32>, vector<64x256xf32> -> vector<64x256xf32>
    %16 = vector.broadcast %13 : vector<1x256xf32> to vector<64x256xf32>
    %17 = arith.addf %15, %16 : vector<64x256xf32>
    %c32 = arith.constant 32 : index
    %c0_13 = arith.constant 0 : index
    %18 = vector.load %arg2[%c32, %c0_13] : memref<104x256xf32, #tpu.memory_space<vmem>>, vector<64x256xf32>
    %cst_14 = arith.constant 0.000000e+00 : f32
    %19 = vector.broadcast %cst_14 : f32 to vector<8x64xf32>
    %cst_15 = arith.constant 0.000000e+00 : f32
    %20 = vector.broadcast %cst_15 : f32 to vector<8x64xf32>
    %21 = tpu.iota {dimensions = array<i32: 1>} : vector<1x64xi32>
    %c32_i32 = arith.constant 32 : i32
    %22 = vector.broadcast %c32_i32 : i32 to vector<1x64xi32>
    %23 = arith.cmpi slt, %21, %22 : vector<1x64xi32>
    %cst_16 = arith.constant 1.000000e+00 : f32
    %cst_17 = arith.constant 0.000000e+00 : f32
    %24 = vector.broadcast %cst_16 : f32 to vector<1x64xf32>
    %25 = vector.broadcast %cst_17 : f32 to vector<1x64xf32>
    %26 = arith.select %23, %24, %25 : vector<1x64xi1>, vector<1x64xf32>
    %cst_18 = arith.constant 1.000000e+00 : f32
    %27 = vector.broadcast %cst_18 : f32 to vector<1x64xf32>
    %28 = arith.subf %27, %26 : vector<1x64xf32>
    %29 = vector.extract_strided_slice %17 {offsets = [0, 0], sizes = [8, 256], strides = [1, 1]} : vector<64x256xf32> to vector<8x256xf32>
    %cst_19 = arith.constant dense<0.000000e+00> : vector<8x256xf32>
    %30 = tpu.matmul %19, %18, %cst_19 {dimension_numbers = #tpu.dot_dimension_numbers<[1], [0], [0], [1], [0, 0, 1, 1], [], []>} : vector<8x64xf32>, vector<64x256xf32>, vector<8x256xf32> -> vector<8x256xf32>
    %31 = arith.addf %30, %29 : vector<8x256xf32>
    %32 = math.tanh %31 : vector<8x256xf32>
    %33 = vector.extract_strided_slice %32 {offsets = [0, 0], sizes = [8, 64], strides = [1, 1]} : vector<8x256xf32> to vector<8x64xf32>
    %cst_20 = arith.constant 5.000000e-01 : f32
    %34 = vector.broadcast %cst_20 : f32 to vector<8x64xf32>
    %35 = arith.mulf %34, %33 : vector<8x64xf32>
    %cst_21 = arith.constant 5.000000e-01 : f32
    %36 = vector.broadcast %cst_21 : f32 to vector<8x64xf32>
    %37 = arith.addf %35, %36 : vector<8x64xf32>
    %38 = vector.extract_strided_slice %32 {offsets = [0, 64], sizes = [8, 64], strides = [1, 1]} : vector<8x256xf32> to vector<8x64xf32>
    %cst_22 = arith.constant 5.000000e-01 : f32
    %39 = vector.broadcast %cst_22 : f32 to vector<8x64xf32>
    %40 = arith.mulf %39, %38 : vector<8x64xf32>
    %cst_23 = arith.constant 5.000000e-01 : f32
    %41 = vector.broadcast %cst_23 : f32 to vector<8x64xf32>
    %42 = arith.addf %40, %41 : vector<8x64xf32>
    %43 = vector.extract_strided_slice %32 {offsets = [0, 128], sizes = [8, 64], strides = [1, 1]} : vector<8x256xf32> to vector<8x64xf32>
    %44 = vector.extract_strided_slice %32 {offsets = [0, 192], sizes = [8, 64], strides = [1, 1]} : vector<8x256xf32> to vector<8x64xf32>
    %cst_24 = arith.constant 5.000000e-01 : f32
    %45 = vector.broadcast %cst_24 : f32 to vector<8x64xf32>
    %46 = arith.mulf %45, %44 : vector<8x64xf32>
    %cst_25 = arith.constant 5.000000e-01 : f32
    %47 = vector.broadcast %cst_25 : f32 to vector<8x64xf32>
    %48 = arith.addf %46, %47 : vector<8x64xf32>
    %49 = arith.mulf %42, %20 : vector<8x64xf32>
    %50 = arith.mulf %37, %43 : vector<8x64xf32>
    %51 = arith.addf %49, %50 : vector<8x64xf32>
    %52 = math.tanh %51 : vector<8x64xf32>
    %53 = arith.mulf %48, %52 : vector<8x64xf32>
    %54 = vector.broadcast %26 : vector<1x64xf32> to vector<8x64xf32>
    %55 = arith.mulf %51, %54 : vector<8x64xf32>
    %56 = vector.broadcast %26 : vector<1x64xf32> to vector<8x64xf32>
    %57 = arith.mulf %53, %56 : vector<8x64xf32>
    %58 = vector.extract_strided_slice %17 {offsets = [8, 0], sizes = [8, 256], strides = [1, 1]} : vector<64x256xf32> to vector<8x256xf32>
    %cst_26 = arith.constant dense<0.000000e+00> : vector<8x256xf32>
    %59 = tpu.matmul %57, %18, %cst_26 {dimension_numbers = #tpu.dot_dimension_numbers<[1], [0], [0], [1], [0, 0, 1, 1], [], []>} : vector<8x64xf32>, vector<64x256xf32>, vector<8x256xf32> -> vector<8x256xf32>
    %60 = arith.addf %59, %58 : vector<8x256xf32>
    %61 = math.tanh %60 : vector<8x256xf32>
    %62 = vector.extract_strided_slice %61 {offsets = [0, 0], sizes = [8, 64], strides = [1, 1]} : vector<8x256xf32> to vector<8x64xf32>
    %cst_27 = arith.constant 5.000000e-01 : f32
    %63 = vector.broadcast %cst_27 : f32 to vector<8x64xf32>
    %64 = arith.mulf %63, %62 : vector<8x64xf32>
    %cst_28 = arith.constant 5.000000e-01 : f32
    %65 = vector.broadcast %cst_28 : f32 to vector<8x64xf32>
    %66 = arith.addf %64, %65 : vector<8x64xf32>
    %67 = vector.extract_strided_slice %61 {offsets = [0, 64], sizes = [8, 64], strides = [1, 1]} : vector<8x256xf32> to vector<8x64xf32>
    %cst_29 = arith.constant 5.000000e-01 : f32
    %68 = vector.broadcast %cst_29 : f32 to vector<8x64xf32>
    %69 = arith.mulf %68, %67 : vector<8x64xf32>
    %cst_30 = arith.constant 5.000000e-01 : f32
    %70 = vector.broadcast %cst_30 : f32 to vector<8x64xf32>
    %71 = arith.addf %69, %70 : vector<8x64xf32>
    %72 = vector.extract_strided_slice %61 {offsets = [0, 128], sizes = [8, 64], strides = [1, 1]} : vector<8x256xf32> to vector<8x64xf32>
    %73 = vector.extract_strided_slice %61 {offsets = [0, 192], sizes = [8, 64], strides = [1, 1]} : vector<8x256xf32> to vector<8x64xf32>
    %cst_31 = arith.constant 5.000000e-01 : f32
    %74 = vector.broadcast %cst_31 : f32 to vector<8x64xf32>
    %75 = arith.mulf %74, %73 : vector<8x64xf32>
    %cst_32 = arith.constant 5.000000e-01 : f32
    %76 = vector.broadcast %cst_32 : f32 to vector<8x64xf32>
    %77 = arith.addf %75, %76 : vector<8x64xf32>
    %78 = arith.mulf %71, %55 : vector<8x64xf32>
    %79 = arith.mulf %66, %72 : vector<8x64xf32>
    %80 = arith.addf %78, %79 : vector<8x64xf32>
    %81 = math.tanh %80 : vector<8x64xf32>
    %82 = arith.mulf %77, %81 : vector<8x64xf32>
    %83 = vector.extract_strided_slice %17 {offsets = [16, 0], sizes = [8, 256], strides = [1, 1]} : vector<64x256xf32> to vector<8x256xf32>
    %cst_33 = arith.constant dense<0.000000e+00> : vector<8x256xf32>
    %84 = tpu.matmul %82, %18, %cst_33 {dimension_numbers = #tpu.dot_dimension_numbers<[1], [0], [0], [1], [0, 0, 1, 1], [], []>} : vector<8x64xf32>, vector<64x256xf32>, vector<8x256xf32> -> vector<8x256xf32>
    %85 = arith.addf %84, %83 : vector<8x256xf32>
    %86 = math.tanh %85 : vector<8x256xf32>
    %87 = vector.extract_strided_slice %86 {offsets = [0, 0], sizes = [8, 64], strides = [1, 1]} : vector<8x256xf32> to vector<8x64xf32>
    %cst_34 = arith.constant 5.000000e-01 : f32
    %88 = vector.broadcast %cst_34 : f32 to vector<8x64xf32>
    %89 = arith.mulf %88, %87 : vector<8x64xf32>
    %cst_35 = arith.constant 5.000000e-01 : f32
    %90 = vector.broadcast %cst_35 : f32 to vector<8x64xf32>
    %91 = arith.addf %89, %90 : vector<8x64xf32>
    %92 = vector.extract_strided_slice %86 {offsets = [0, 64], sizes = [8, 64], strides = [1, 1]} : vector<8x256xf32> to vector<8x64xf32>
    %cst_36 = arith.constant 5.000000e-01 : f32
    %93 = vector.broadcast %cst_36 : f32 to vector<8x64xf32>
    %94 = arith.mulf %93, %92 : vector<8x64xf32>
    %cst_37 = arith.constant 5.000000e-01 : f32
    %95 = vector.broadcast %cst_37 : f32 to vector<8x64xf32>
    %96 = arith.addf %94, %95 : vector<8x64xf32>
    %97 = vector.extract_strided_slice %86 {offsets = [0, 128], sizes = [8, 64], strides = [1, 1]} : vector<8x256xf32> to vector<8x64xf32>
    %98 = vector.extract_strided_slice %86 {offsets = [0, 192], sizes = [8, 64], strides = [1, 1]} : vector<8x256xf32> to vector<8x64xf32>
    %cst_38 = arith.constant 5.000000e-01 : f32
    %99 = vector.broadcast %cst_38 : f32 to vector<8x64xf32>
    %100 = arith.mulf %99, %98 : vector<8x64xf32>
    %cst_39 = arith.constant 5.000000e-01 : f32
    %101 = vector.broadcast %cst_39 : f32 to vector<8x64xf32>
    %102 = arith.addf %100, %101 : vector<8x64xf32>
    %103 = arith.mulf %96, %80 : vector<8x64xf32>
    %104 = arith.mulf %91, %97 : vector<8x64xf32>
    %105 = arith.addf %103, %104 : vector<8x64xf32>
    %106 = math.tanh %105 : vector<8x64xf32>
    %107 = arith.mulf %102, %106 : vector<8x64xf32>
    %108 = vector.extract_strided_slice %17 {offsets = [24, 0], sizes = [8, 256], strides = [1, 1]} : vector<64x256xf32> to vector<8x256xf32>
    %cst_40 = arith.constant dense<0.000000e+00> : vector<8x256xf32>
    %109 = tpu.matmul %107, %18, %cst_40 {dimension_numbers = #tpu.dot_dimension_numbers<[1], [0], [0], [1], [0, 0, 1, 1], [], []>} : vector<8x64xf32>, vector<64x256xf32>, vector<8x256xf32> -> vector<8x256xf32>
    %110 = arith.addf %109, %108 : vector<8x256xf32>
    %111 = math.tanh %110 : vector<8x256xf32>
    %112 = vector.extract_strided_slice %111 {offsets = [0, 0], sizes = [8, 64], strides = [1, 1]} : vector<8x256xf32> to vector<8x64xf32>
    %cst_41 = arith.constant 5.000000e-01 : f32
    %113 = vector.broadcast %cst_41 : f32 to vector<8x64xf32>
    %114 = arith.mulf %113, %112 : vector<8x64xf32>
    %cst_42 = arith.constant 5.000000e-01 : f32
    %115 = vector.broadcast %cst_42 : f32 to vector<8x64xf32>
    %116 = arith.addf %114, %115 : vector<8x64xf32>
    %117 = vector.extract_strided_slice %111 {offsets = [0, 64], sizes = [8, 64], strides = [1, 1]} : vector<8x256xf32> to vector<8x64xf32>
    %cst_43 = arith.constant 5.000000e-01 : f32
    %118 = vector.broadcast %cst_43 : f32 to vector<8x64xf32>
    %119 = arith.mulf %118, %117 : vector<8x64xf32>
    %cst_44 = arith.constant 5.000000e-01 : f32
    %120 = vector.broadcast %cst_44 : f32 to vector<8x64xf32>
    %121 = arith.addf %119, %120 : vector<8x64xf32>
    %122 = vector.extract_strided_slice %111 {offsets = [0, 128], sizes = [8, 64], strides = [1, 1]} : vector<8x256xf32> to vector<8x64xf32>
    %123 = vector.extract_strided_slice %111 {offsets = [0, 192], sizes = [8, 64], strides = [1, 1]} : vector<8x256xf32> to vector<8x64xf32>
    %cst_45 = arith.constant 5.000000e-01 : f32
    %124 = vector.broadcast %cst_45 : f32 to vector<8x64xf32>
    %125 = arith.mulf %124, %123 : vector<8x64xf32>
    %cst_46 = arith.constant 5.000000e-01 : f32
    %126 = vector.broadcast %cst_46 : f32 to vector<8x64xf32>
    %127 = arith.addf %125, %126 : vector<8x64xf32>
    %128 = arith.mulf %121, %105 : vector<8x64xf32>
    %129 = arith.mulf %116, %122 : vector<8x64xf32>
    %130 = arith.addf %128, %129 : vector<8x64xf32>
    %131 = math.tanh %130 : vector<8x64xf32>
    %132 = arith.mulf %127, %131 : vector<8x64xf32>
    %133 = vector.extract_strided_slice %17 {offsets = [32, 0], sizes = [8, 256], strides = [1, 1]} : vector<64x256xf32> to vector<8x256xf32>
    %cst_47 = arith.constant dense<0.000000e+00> : vector<8x256xf32>
    %134 = tpu.matmul %132, %18, %cst_47 {dimension_numbers = #tpu.dot_dimension_numbers<[1], [0], [0], [1], [0, 0, 1, 1], [], []>} : vector<8x64xf32>, vector<64x256xf32>, vector<8x256xf32> -> vector<8x256xf32>
    %135 = arith.addf %134, %133 : vector<8x256xf32>
    %136 = math.tanh %135 : vector<8x256xf32>
    %137 = vector.extract_strided_slice %136 {offsets = [0, 0], sizes = [8, 64], strides = [1, 1]} : vector<8x256xf32> to vector<8x64xf32>
    %cst_48 = arith.constant 5.000000e-01 : f32
    %138 = vector.broadcast %cst_48 : f32 to vector<8x64xf32>
    %139 = arith.mulf %138, %137 : vector<8x64xf32>
    %cst_49 = arith.constant 5.000000e-01 : f32
    %140 = vector.broadcast %cst_49 : f32 to vector<8x64xf32>
    %141 = arith.addf %139, %140 : vector<8x64xf32>
    %142 = vector.extract_strided_slice %136 {offsets = [0, 64], sizes = [8, 64], strides = [1, 1]} : vector<8x256xf32> to vector<8x64xf32>
    %cst_50 = arith.constant 5.000000e-01 : f32
    %143 = vector.broadcast %cst_50 : f32 to vector<8x64xf32>
    %144 = arith.mulf %143, %142 : vector<8x64xf32>
    %cst_51 = arith.constant 5.000000e-01 : f32
    %145 = vector.broadcast %cst_51 : f32 to vector<8x64xf32>
    %146 = arith.addf %144, %145 : vector<8x64xf32>
    %147 = vector.extract_strided_slice %136 {offsets = [0, 128], sizes = [8, 64], strides = [1, 1]} : vector<8x256xf32> to vector<8x64xf32>
    %148 = vector.extract_strided_slice %136 {offsets = [0, 192], sizes = [8, 64], strides = [1, 1]} : vector<8x256xf32> to vector<8x64xf32>
    %cst_52 = arith.constant 5.000000e-01 : f32
    %149 = vector.broadcast %cst_52 : f32 to vector<8x64xf32>
    %150 = arith.mulf %149, %148 : vector<8x64xf32>
    %cst_53 = arith.constant 5.000000e-01 : f32
    %151 = vector.broadcast %cst_53 : f32 to vector<8x64xf32>
    %152 = arith.addf %150, %151 : vector<8x64xf32>
    %153 = arith.mulf %146, %130 : vector<8x64xf32>
    %154 = arith.mulf %141, %147 : vector<8x64xf32>
    %155 = arith.addf %153, %154 : vector<8x64xf32>
    %156 = math.tanh %155 : vector<8x64xf32>
    %157 = arith.mulf %152, %156 : vector<8x64xf32>
    %158 = vector.extract_strided_slice %17 {offsets = [40, 0], sizes = [8, 256], strides = [1, 1]} : vector<64x256xf32> to vector<8x256xf32>
    %cst_54 = arith.constant dense<0.000000e+00> : vector<8x256xf32>
    %159 = tpu.matmul %157, %18, %cst_54 {dimension_numbers = #tpu.dot_dimension_numbers<[1], [0], [0], [1], [0, 0, 1, 1], [], []>} : vector<8x64xf32>, vector<64x256xf32>, vector<8x256xf32> -> vector<8x256xf32>
    %160 = arith.addf %159, %158 : vector<8x256xf32>
    %161 = math.tanh %160 : vector<8x256xf32>
    %162 = vector.extract_strided_slice %161 {offsets = [0, 0], sizes = [8, 64], strides = [1, 1]} : vector<8x256xf32> to vector<8x64xf32>
    %cst_55 = arith.constant 5.000000e-01 : f32
    %163 = vector.broadcast %cst_55 : f32 to vector<8x64xf32>
    %164 = arith.mulf %163, %162 : vector<8x64xf32>
    %cst_56 = arith.constant 5.000000e-01 : f32
    %165 = vector.broadcast %cst_56 : f32 to vector<8x64xf32>
    %166 = arith.addf %164, %165 : vector<8x64xf32>
    %167 = vector.extract_strided_slice %161 {offsets = [0, 64], sizes = [8, 64], strides = [1, 1]} : vector<8x256xf32> to vector<8x64xf32>
    %cst_57 = arith.constant 5.000000e-01 : f32
    %168 = vector.broadcast %cst_57 : f32 to vector<8x64xf32>
    %169 = arith.mulf %168, %167 : vector<8x64xf32>
    %cst_58 = arith.constant 5.000000e-01 : f32
    %170 = vector.broadcast %cst_58 : f32 to vector<8x64xf32>
    %171 = arith.addf %169, %170 : vector<8x64xf32>
    %172 = vector.extract_strided_slice %161 {offsets = [0, 128], sizes = [8, 64], strides = [1, 1]} : vector<8x256xf32> to vector<8x64xf32>
    %173 = vector.extract_strided_slice %161 {offsets = [0, 192], sizes = [8, 64], strides = [1, 1]} : vector<8x256xf32> to vector<8x64xf32>
    %cst_59 = arith.constant 5.000000e-01 : f32
    %174 = vector.broadcast %cst_59 : f32 to vector<8x64xf32>
    %175 = arith.mulf %174, %173 : vector<8x64xf32>
    %cst_60 = arith.constant 5.000000e-01 : f32
    %176 = vector.broadcast %cst_60 : f32 to vector<8x64xf32>
    %177 = arith.addf %175, %176 : vector<8x64xf32>
    %178 = arith.mulf %171, %155 : vector<8x64xf32>
    %179 = arith.mulf %166, %172 : vector<8x64xf32>
    %180 = arith.addf %178, %179 : vector<8x64xf32>
    %181 = math.tanh %180 : vector<8x64xf32>
    %182 = arith.mulf %177, %181 : vector<8x64xf32>
    %183 = vector.extract_strided_slice %17 {offsets = [48, 0], sizes = [8, 256], strides = [1, 1]} : vector<64x256xf32> to vector<8x256xf32>
    %cst_61 = arith.constant dense<0.000000e+00> : vector<8x256xf32>
    %184 = tpu.matmul %182, %18, %cst_61 {dimension_numbers = #tpu.dot_dimension_numbers<[1], [0], [0], [1], [0, 0, 1, 1], [], []>} : vector<8x64xf32>, vector<64x256xf32>, vector<8x256xf32> -> vector<8x256xf32>
    %185 = arith.addf %184, %183 : vector<8x256xf32>
    %186 = math.tanh %185 : vector<8x256xf32>
    %187 = vector.extract_strided_slice %186 {offsets = [0, 0], sizes = [8, 64], strides = [1, 1]} : vector<8x256xf32> to vector<8x64xf32>
    %cst_62 = arith.constant 5.000000e-01 : f32
    %188 = vector.broadcast %cst_62 : f32 to vector<8x64xf32>
    %189 = arith.mulf %188, %187 : vector<8x64xf32>
    %cst_63 = arith.constant 5.000000e-01 : f32
    %190 = vector.broadcast %cst_63 : f32 to vector<8x64xf32>
    %191 = arith.addf %189, %190 : vector<8x64xf32>
    %192 = vector.extract_strided_slice %186 {offsets = [0, 64], sizes = [8, 64], strides = [1, 1]} : vector<8x256xf32> to vector<8x64xf32>
    %cst_64 = arith.constant 5.000000e-01 : f32
    %193 = vector.broadcast %cst_64 : f32 to vector<8x64xf32>
    %194 = arith.mulf %193, %192 : vector<8x64xf32>
    %cst_65 = arith.constant 5.000000e-01 : f32
    %195 = vector.broadcast %cst_65 : f32 to vector<8x64xf32>
    %196 = arith.addf %194, %195 : vector<8x64xf32>
    %197 = vector.extract_strided_slice %186 {offsets = [0, 128], sizes = [8, 64], strides = [1, 1]} : vector<8x256xf32> to vector<8x64xf32>
    %198 = vector.extract_strided_slice %186 {offsets = [0, 192], sizes = [8, 64], strides = [1, 1]} : vector<8x256xf32> to vector<8x64xf32>
    %cst_66 = arith.constant 5.000000e-01 : f32
    %199 = vector.broadcast %cst_66 : f32 to vector<8x64xf32>
    %200 = arith.mulf %199, %198 : vector<8x64xf32>
    %cst_67 = arith.constant 5.000000e-01 : f32
    %201 = vector.broadcast %cst_67 : f32 to vector<8x64xf32>
    %202 = arith.addf %200, %201 : vector<8x64xf32>
    %203 = arith.mulf %196, %180 : vector<8x64xf32>
    %204 = arith.mulf %191, %197 : vector<8x64xf32>
    %205 = arith.addf %203, %204 : vector<8x64xf32>
    %206 = math.tanh %205 : vector<8x64xf32>
    %207 = arith.mulf %202, %206 : vector<8x64xf32>
    %208 = vector.extract_strided_slice %17 {offsets = [56, 0], sizes = [8, 256], strides = [1, 1]} : vector<64x256xf32> to vector<8x256xf32>
    %cst_68 = arith.constant dense<0.000000e+00> : vector<8x256xf32>
    %209 = tpu.matmul %207, %18, %cst_68 {dimension_numbers = #tpu.dot_dimension_numbers<[1], [0], [0], [1], [0, 0, 1, 1], [], []>} : vector<8x64xf32>, vector<64x256xf32>, vector<8x256xf32> -> vector<8x256xf32>
    %210 = arith.addf %209, %208 : vector<8x256xf32>
    %211 = math.tanh %210 : vector<8x256xf32>
    %212 = vector.extract_strided_slice %211 {offsets = [0, 0], sizes = [8, 64], strides = [1, 1]} : vector<8x256xf32> to vector<8x64xf32>
    %cst_69 = arith.constant 5.000000e-01 : f32
    %213 = vector.broadcast %cst_69 : f32 to vector<8x64xf32>
    %214 = arith.mulf %213, %212 : vector<8x64xf32>
    %cst_70 = arith.constant 5.000000e-01 : f32
    %215 = vector.broadcast %cst_70 : f32 to vector<8x64xf32>
    %216 = arith.addf %214, %215 : vector<8x64xf32>
    %217 = vector.extract_strided_slice %211 {offsets = [0, 64], sizes = [8, 64], strides = [1, 1]} : vector<8x256xf32> to vector<8x64xf32>
    %cst_71 = arith.constant 5.000000e-01 : f32
    %218 = vector.broadcast %cst_71 : f32 to vector<8x64xf32>
    %219 = arith.mulf %218, %217 : vector<8x64xf32>
    %cst_72 = arith.constant 5.000000e-01 : f32
    %220 = vector.broadcast %cst_72 : f32 to vector<8x64xf32>
    %221 = arith.addf %219, %220 : vector<8x64xf32>
    %222 = vector.extract_strided_slice %211 {offsets = [0, 128], sizes = [8, 64], strides = [1, 1]} : vector<8x256xf32> to vector<8x64xf32>
    %223 = vector.extract_strided_slice %211 {offsets = [0, 192], sizes = [8, 64], strides = [1, 1]} : vector<8x256xf32> to vector<8x64xf32>
    %cst_73 = arith.constant 5.000000e-01 : f32
    %224 = vector.broadcast %cst_73 : f32 to vector<8x64xf32>
    %225 = arith.mulf %224, %223 : vector<8x64xf32>
    %cst_74 = arith.constant 5.000000e-01 : f32
    %226 = vector.broadcast %cst_74 : f32 to vector<8x64xf32>
    %227 = arith.addf %225, %226 : vector<8x64xf32>
    %228 = arith.mulf %221, %205 : vector<8x64xf32>
    %229 = arith.mulf %216, %222 : vector<8x64xf32>
    %230 = arith.addf %228, %229 : vector<8x64xf32>
    %231 = math.tanh %230 : vector<8x64xf32>
    %232 = arith.mulf %227, %231 : vector<8x64xf32>
    %cst_75 = arith.constant dense<0.000000e+00> : vector<8x256xf32>
    %233 = tpu.matmul %232, %18, %cst_75 {dimension_numbers = #tpu.dot_dimension_numbers<[1], [0], [0], [1], [0, 0, 1, 1], [], []>} : vector<8x64xf32>, vector<64x256xf32>, vector<8x256xf32> -> vector<8x256xf32>
    %234 = vector.broadcast %13 : vector<1x256xf32> to vector<8x256xf32>
    %235 = arith.addf %233, %234 : vector<8x256xf32>
    %236 = math.tanh %235 : vector<8x256xf32>
    %237 = vector.extract_strided_slice %236 {offsets = [0, 0], sizes = [8, 64], strides = [1, 1]} : vector<8x256xf32> to vector<8x64xf32>
    %cst_76 = arith.constant 5.000000e-01 : f32
    %238 = vector.broadcast %cst_76 : f32 to vector<8x64xf32>
    %239 = arith.mulf %238, %237 : vector<8x64xf32>
    %cst_77 = arith.constant 5.000000e-01 : f32
    %240 = vector.broadcast %cst_77 : f32 to vector<8x64xf32>
    %241 = arith.addf %239, %240 : vector<8x64xf32>
    %242 = vector.extract_strided_slice %236 {offsets = [0, 64], sizes = [8, 64], strides = [1, 1]} : vector<8x256xf32> to vector<8x64xf32>
    %cst_78 = arith.constant 5.000000e-01 : f32
    %243 = vector.broadcast %cst_78 : f32 to vector<8x64xf32>
    %244 = arith.mulf %243, %242 : vector<8x64xf32>
    %cst_79 = arith.constant 5.000000e-01 : f32
    %245 = vector.broadcast %cst_79 : f32 to vector<8x64xf32>
    %246 = arith.addf %244, %245 : vector<8x64xf32>
    %247 = vector.extract_strided_slice %236 {offsets = [0, 128], sizes = [8, 64], strides = [1, 1]} : vector<8x256xf32> to vector<8x64xf32>
    %248 = vector.extract_strided_slice %236 {offsets = [0, 192], sizes = [8, 64], strides = [1, 1]} : vector<8x256xf32> to vector<8x64xf32>
    %cst_80 = arith.constant 5.000000e-01 : f32
    %249 = vector.broadcast %cst_80 : f32 to vector<8x64xf32>
    %250 = arith.mulf %249, %248 : vector<8x64xf32>
    %cst_81 = arith.constant 5.000000e-01 : f32
    %251 = vector.broadcast %cst_81 : f32 to vector<8x64xf32>
    %252 = arith.addf %250, %251 : vector<8x64xf32>
    %253 = arith.mulf %246, %230 : vector<8x64xf32>
    %254 = arith.mulf %241, %247 : vector<8x64xf32>
    %255 = arith.addf %253, %254 : vector<8x64xf32>
    %256 = math.tanh %255 : vector<8x64xf32>
    %257 = arith.mulf %252, %256 : vector<8x64xf32>
    %258 = vector.broadcast %26 : vector<1x64xf32> to vector<8x64xf32>
    %259 = arith.mulf %230, %258 : vector<8x64xf32>
    %260 = vector.broadcast %28 : vector<1x64xf32> to vector<8x64xf32>
    %261 = arith.mulf %255, %260 : vector<8x64xf32>
    %262 = arith.addf %259, %261 : vector<8x64xf32>
    %263 = vector.broadcast %26 : vector<1x64xf32> to vector<8x64xf32>
    %264 = arith.mulf %232, %263 : vector<8x64xf32>
    %265 = vector.broadcast %28 : vector<1x64xf32> to vector<8x64xf32>
    %266 = arith.mulf %257, %265 : vector<8x64xf32>
    %267 = arith.addf %264, %266 : vector<8x64xf32>
    %268 = math.tanh %267 : vector<8x64xf32>
    %c832 = arith.constant 832 : index
    %c0_82 = arith.constant 0 : index
    %269 = vector.load %arg3[%c832, %c0_82] : memref<984x64xf32, #tpu.memory_space<vmem>>, vector<64x64xf32>
    %cst_83 = arith.constant dense<0.000000e+00> : vector<8x64xf32>
    %270 = tpu.matmul %268, %269, %cst_83 {dimension_numbers = #tpu.dot_dimension_numbers<[1], [0], [0], [1], [0, 0, 1, 1], [], []>} : vector<8x64xf32>, vector<64x64xf32>, vector<8x64xf32> -> vector<8x64xf32>
    %271 = math.tanh %262 : vector<8x64xf32>
    %c896 = arith.constant 896 : index
    %c0_84 = arith.constant 0 : index
    %272 = vector.load %arg3[%c896, %c0_84] : memref<984x64xf32, #tpu.memory_space<vmem>>, vector<64x64xf32>
    %cst_85 = arith.constant dense<0.000000e+00> : vector<8x64xf32>
    %273 = tpu.matmul %271, %272, %cst_85 {dimension_numbers = #tpu.dot_dimension_numbers<[1], [0], [0], [1], [0, 0, 1, 1], [], []>} : vector<8x64xf32>, vector<64x64xf32>, vector<8x64xf32> -> vector<8x64xf32>
    %274 = arith.addf %270, %273 : vector<8x64xf32>
    %c976 = arith.constant 976 : index
    %c0_86 = arith.constant 0 : index
    %275 = vector.load %arg3[%c976, %c0_86] : memref<984x64xf32, #tpu.memory_space<vmem>>, vector<1x64xf32>
    %276 = vector.broadcast %275 : vector<1x64xf32> to vector<8x64xf32>
    %277 = arith.addf %274, %276 : vector<8x64xf32>
    %278 = arith.mulf %10, %277 : vector<8x64xf32>
    %279 = math.tanh %278 : vector<8x64xf32>
    %c0_87 = arith.constant 0 : index
    %c0_88 = arith.constant 0 : index
    %280 = vector.load %arg4[%c0_87, %c0_88] : memref<208x128xf32, #tpu.memory_space<vmem>>, vector<64x128xf32>
    %cst_89 = arith.constant dense<0.000000e+00> : vector<8x128xf32>
    %281 = tpu.matmul %279, %280, %cst_89 {dimension_numbers = #tpu.dot_dimension_numbers<[1], [0], [0], [1], [0, 0, 1, 1], [], []>} : vector<8x64xf32>, vector<64x128xf32>, vector<8x128xf32> -> vector<8x128xf32>
    %c192 = arith.constant 192 : index
    %c0_90 = arith.constant 0 : index
    %282 = vector.load %arg4[%c192, %c0_90] : memref<208x128xf32, #tpu.memory_space<vmem>>, vector<1x128xf32>
    %283 = vector.broadcast %282 : vector<1x128xf32> to vector<8x128xf32>
    %284 = arith.addf %281, %283 : vector<8x128xf32>
    %285 = math.tanh %284 : vector<8x128xf32>
    %c64 = arith.constant 64 : index
    %c0_91 = arith.constant 0 : index
    %286 = vector.load %arg4[%c64, %c0_91] : memref<208x128xf32, #tpu.memory_space<vmem>>, vector<128x128xf32>
    %cst_92 = arith.constant dense<0.000000e+00> : vector<8x128xf32>
    %287 = tpu.matmul %285, %286, %cst_92 {dimension_numbers = #tpu.dot_dimension_numbers<[1], [0], [0], [1], [0, 0, 1, 1], [], []>} : vector<8x128xf32>, vector<128x128xf32>, vector<8x128xf32> -> vector<8x128xf32>
    %c200 = arith.constant 200 : index
    %c0_93 = arith.constant 0 : index
    %288 = vector.load %arg4[%c200, %c0_93] : memref<208x128xf32, #tpu.memory_space<vmem>>, vector<1x128xf32>
    %289 = vector.broadcast %288 : vector<1x128xf32> to vector<8x128xf32>
    %290 = arith.addf %287, %289 : vector<8x128xf32>
    %c0_94 = arith.constant 0 : index
    %c0_95 = arith.constant 0 : index
    %291 = vector.load %arg5[%c0_94, %c0_95] : memref<8x128xf32, #tpu.memory_space<vmem>>, vector<8x128xf32>
    tpu.vector_store %arg5[%c0_94, %c0_95], %290 {strides = array<i32>} : memref<8x128xf32, #tpu.memory_space<vmem>>, vector<8x128xf32>,
    return
  }
}

</mosaic_0001>

<llo_original>
// kernel: vqa_forward.1
$region0: #{vqa_forward.1}
  #allocation0 [shape = 'u32[]', space=smem, size = 0x4, offset = 0x4, fixed_abs, tag = 'smem constant byte address 0x4 - core index']
  #allocation1 [shape = 'u32[144,128]{1,0:T(1,128)}', space=vmem, size = 0x12000, scoped, tag = 'internal scratch']
  %s0 = inlined_call_operand.vmem [shape: f32[8,768], index: 0, kind: input, shape index: {}]
  %s1 = inlined_call_operand.vmem [shape: f32[64,32], index: 1, kind: input, shape index: {}]
  %s2 = inlined_call_operand.vmem [shape: f32[104,256], index: 2, kind: input, shape index: {}]
  %s3 = inlined_call_operand.vmem [shape: f32[984,64], index: 3, kind: input, shape index: {}]
  %s4 = inlined_call_operand.vmem [shape: f32[208,128], index: 4, kind: input, shape index: {}]
  %s5 = inlined_call_operand.vmem [shape: f32[8,128], index: 5, kind: output, shape index: {}]
  %s6 = sld [smem:[#allocation0]]
  $region30: #{vqa_forward.1} parent=0
    _
  %s8 = ssub.s32 1, %s6
  %s9 = scalar_select 0, %s8, %s6
  // Predicated region
  $region2: #{vqa_forward.1} parent=0 // pred_check
    _
  $region3: #{vqa_forward.1} parent=0 // pred_check_branch
    %11 = sbr.rel (0) target = $region5
  $region4: #{vqa_forward.1} parent=0 // pred_region
    _
  $region5: #{vqa_forward.1} parent=0 // pred_fallthru
    _
  // Predicated region
  $region6: #{vqa_forward.1} parent=0 // pred_check
    _
  $region7: #{vqa_forward.1} parent=0 // pred_check_branch
    %13 = sbr.rel (0) target = $region9
  $region8: #{vqa_forward.1} parent=0 // pred_region
    _
  $region9: #{vqa_forward.1} parent=0 // pred_fallthru
    _
  // Predicated region
  $region10: #{vqa_forward.1} parent=0 // pred_check
    _
  $region11: #{vqa_forward.1} parent=0 // pred_check_branch
    %15 = sbr.rel (0) target = $region13
  $region12: #{vqa_forward.1} parent=0 // pred_region
    _
  $region13: #{vqa_forward.1} parent=0 // pred_fallthru
    _
  // Predicated region
  $region14: #{vqa_forward.1} parent=0 // pred_check
    _
  $region15: #{vqa_forward.1} parent=0 // pred_check_branch
    %17 = sbr.rel (0) target = $region17
  $region16: #{vqa_forward.1} parent=0 // pred_region
    _
  $region17: #{vqa_forward.1} parent=0 // pred_fallthru
    _
  // Predicated region
  $region18: #{vqa_forward.1} parent=0 // pred_check
    _
  $region19: #{vqa_forward.1} parent=0 // pred_check_branch
    %19 = sbr.rel (0) target = $region21
  $region20: #{vqa_forward.1} parent=0 // pred_region
    _
  $region21: #{vqa_forward.1} parent=0 // pred_fallthru
    _
  %v20 = vld [vmem:[%s0] sm:$0xff]
  %v21 = vld [vmem:[%s0 + $0x8] sm:$0xff]
  %v22 = vld [vmem:[%s0 + $0x10] sm:$0xff]
  %v23 = vld [vmem:[%s0 + $0x18] sm:$0xff]
  %v24 = vld [vmem:[%s0 + $0x20] sm:$0xff]
  %v25 = vld [vmem:[%s0 + $0x28] sm:$0xff]
  %v26 = vld [vmem:[%s3] sm:$0xff]
  %v27 = vld [vmem:[%s3 + $0x8] sm:$0xff]
  %v28 = vld [vmem:[%s3 + $0x10] sm:$0xff]
  %v29 = vld [vmem:[%s3 + $0x18] sm:$0xff]
  %v30 = vld [vmem:[%s3 + $0x20] sm:$0xff]
  %v31 = vld [vmem:[%s3 + $0x28] sm:$0xff]
  %v32 = vld [vmem:[%s3 + $0x30] sm:$0xff]
  %v33 = vld [vmem:[%s3 + $0x38] sm:$0xff]
  %v34 = vld [vmem:[%s3 + $0x40] sm:$0xff]
  %v35 = vld [vmem:[%s3 + $0x48] sm:$0xff]
  %v36 = vld [vmem:[%s3 + $0x50] sm:$0xff]
  %v37 = vld [vmem:[%s3 + $0x58] sm:$0xff]
  %v38 = vld [vmem:[%s3 + $0x60] sm:$0xff]
  %v39 = vld [vmem:[%s3 + $0x68] sm:$0xff]
  %v40 = vld [vmem:[%s3 + $0x70] sm:$0xff]
  %v41 = vld [vmem:[%s3 + $0x78] sm:$0xff]
  %v42 = vld [vmem:[%s3 + $0x80] sm:$0xff]
  %v43 = vld [vmem:[%s3 + $0x88] sm:$0xff]
  %v44 = vld [vmem:[%s3 + $0x90] sm:$0xff]
  %v45 = vld [vmem:[%s3 + $0x98] sm:$0xff]
  %v46 = vld [vmem:[%s3 + $0xa0] sm:$0xff]
  %v47 = vld [vmem:[%s3 + $0xa8] sm:$0xff]
  %v48 = vld [vmem:[%s3 + $0xb0] sm:$0xff]
  %v49 = vld [vmem:[%s3 + $0xb8] sm:$0xff]
  %v50 = vld [vmem:[%s3 + $0xc0] sm:$0xff]
  %v51 = vld [vmem:[%s3 + $0xc8] sm:$0xff]
  %v52 = vld [vmem:[%s3 + $0xd0] sm:$0xff]
  %v53 = vld [vmem:[%s3 + $0xd8] sm:$0xff]
  %v54 = vld [vmem:[%s3 + $0xe0] sm:$0xff]
  %v55 = vld [vmem:[%s3 + $0xe8] sm:$0xff]
  %v56 = vld [vmem:[%s3 + $0xf0] sm:$0xff]
  %v57 = vld [vmem:[%s3 + $0xf8] sm:$0xff]
  %v58 = vld [vmem:[%s3 + $0x100] sm:$0xff]
  %v59 = vld [vmem:[%s3 + $0x108] sm:$0xff]
  %v60 = vld [vmem:[%s3 + $0x110] sm:$0xff]
  %v61 = vld [vmem:[%s3 + $0x118] sm:$0xff]
  %v62 = vld [vmem:[%s3 + $0x120] sm:$0xff]
  %v63 = vld [vmem:[%s3 + $0x128] sm:$0xff]
  %v64 = vld [vmem:[%s3 + $0x130] sm:$0xff]
  %v65 = vld [vmem:[%s3 + $0x138] sm:$0xff]
  %v66 = vld [vmem:[%s3 + $0x140] sm:$0xff]
  %v67 = vld [vmem:[%s3 + $0x148] sm:$0xff]
  %v68 = vld [vmem:[%s3 + $0x150] sm:$0xff]
  %v69 = vld [vmem:[%s3 + $0x158] sm:$0xff]
  %v70 = vld [vmem:[%s3 + $0x160] sm:$0xff]
  %v71 = vld [vmem:[%s3 + $0x168] sm:$0xff]
  %v72 = vld [vmem:[%s3 + $0x170] sm:$0xff]
  %v73 = vld [vmem:[%s3 + $0x178] sm:$0xff]
  %v74 = vld [vmem:[%s3 + $0x180] sm:$0xff]
  %v75 = vld [vmem:[%s3 + $0x188] sm:$0xff]
  %v76 = vld [vmem:[%s3 + $0x190] sm:$0xff]
  %v77 = vld [vmem:[%s3 + $0x198] sm:$0xff]
  %v78 = vld [vmem:[%s3 + $0x1a0] sm:$0xff]
  %v79 = vld [vmem:[%s3 + $0x1a8] sm:$0xff]
  %v80 = vld [vmem:[%s3 + $0x1b0] sm:$0xff]
  %v81 = vld [vmem:[%s3 + $0x1b8] sm:$0xff]
  %v82 = vld [vmem:[%s3 + $0x1c0] sm:$0xff]
  %v83 = vld [vmem:[%s3 + $0x1c8] sm:$0xff]
  %v84 = vld [vmem:[%s3 + $0x1d0] sm:$0xff]
  %v85 = vld [vmem:[%s3 + $0x1d8] sm:$0xff]
  %v86 = vld [vmem:[%s3 + $0x1e0] sm:$0xff]
  %v87 = vld [vmem:[%s3 + $0x1e8] sm:$0xff]
  %v88 = vld [vmem:[%s3 + $0x1f0] sm:$0xff]
  %v89 = vld [vmem:[%s3 + $0x1f8] sm:$0xff]
  %v90 = vld [vmem:[%s3 + $0x200] sm:$0xff]
  %v91 = vld [vmem:[%s3 + $0x208] sm:$0xff]
  %v92 = vld [vmem:[%s3 + $0x210] sm:$0xff]
  %v93 = vld [vmem:[%s3 + $0x218] sm:$0xff]
  %v94 = vld [vmem:[%s3 + $0x220] sm:$0xff]
  %v95 = vld [vmem:[%s3 + $0x228] sm:$0xff]
  %v96 = vld [vmem:[%s3 + $0x230] sm:$0xff]
  %v97 = vld [vmem:[%s3 + $0x238] sm:$0xff]
  %v98 = vld [vmem:[%s3 + $0x240] sm:$0xff]
  %v99 = vld [vmem:[%s3 + $0x248] sm:$0xff]
  %v100 = vld [vmem:[%s3 + $0x250] sm:$0xff]
  %v101 = vld [vmem:[%s3 + $0x258] sm:$0xff]
  %v102 = vld [vmem:[%s3 + $0x260] sm:$0xff]
  %v103 = vld [vmem:[%s3 + $0x268] sm:$0xff]
  %v104 = vld [vmem:[%s3 + $0x270] sm:$0xff]
  %v105 = vld [vmem:[%s3 + $0x278] sm:$0xff]
  %v106 = vld [vmem:[%s3 + $0x280] sm:$0xff]
  %v107 = vld [vmem:[%s3 + $0x288] sm:$0xff]
  %v108 = vld [vmem:[%s3 + $0x290] sm:$0xff]
  %v109 = vld [vmem:[%s3 + $0x298] sm:$0xff]
  %v110 = vld [vmem:[%s3 + $0x2a0] sm:$0xff]
  %v111 = vld [vmem:[%s3 + $0x2a8] sm:$0xff]
  %v112 = vld [vmem:[%s3 + $0x2b0] sm:$0xff]
  %v113 = vld [vmem:[%s3 + $0x2b8] sm:$0xff]
  %v114 = vld [vmem:[%s3 + $0x2c0] sm:$0xff]
  %v115 = vld [vmem:[%s3 + $0x2c8] sm:$0xff]
  %v116 = vld [vmem:[%s3 + $0x2d0] sm:$0xff]
  %v117 = vld [vmem:[%s3 + $0x2d8] sm:$0xff]
  %v118 = vld [vmem:[%s3 + $0x2e0] sm:$0xff]
  %v119 = vld [vmem:[%s3 + $0x2e8] sm:$0xff]
  %v120 = vld [vmem:[%s3 + $0x2f0] sm:$0xff]
  %v121 = vld [vmem:[%s3 + $0x2f8] sm:$0xff]
  %v122 = vld [vmem:[%s3 + $0x3c0] sm:$0x1]
  %v123 = vlaneseq
  %v124 = vshrl.u32 %v123, 7
  %v125 = vsub.s32 0, %v124
  %v126 = vrot.slane %v122, %v125
  %127 = vmatprep.subr.mxu0 0.0
  %128 = vmatpush1.msra.mxu0 %v26
  %129 = vmatprep.subr.mxu0 0.0
  %130 = vmatpush1.msra.mxu0 %v27
  %131 = vmatprep.subr.mxu0 0.0
  %132 = vmatpush1.msra.mxu0 %v28
  %133 = vmatprep.subr.mxu0 0.0
  %134 = vmatpush1.msra.mxu0 %v29
  %135 = vmatprep.subr.mxu0 0.0
  %136 = vmatpush1.msra.mxu0 %v30
  %137 = vmatprep.subr.mxu0 0.0
  %138 = vmatpush1.msra.mxu0 %v31
  %139 = vmatprep.subr.mxu0 0.0
  %140 = vmatpush1.msra.mxu0 %v32
  %141 = vmatprep.subr.mxu0 0.0
  %142 = vmatpush1.msra.mxu0 %v33
  %143 = vmatprep.subr.mxu0 0.0
  %144 = vmatpush1.msra.mxu0 %v34
  %145 = vmatprep.subr.mxu0 0.0
  %146 = vmatpush1.msra.mxu0 %v35
  %147 = vmatprep.subr.mxu0 0.0
  %148 = vmatpush1.msra.mxu0 %v36
  %149 = vmatprep.subr.mxu0 0.0
  %150 = vmatpush1.msra.mxu0 %v37
  %151 = vmatprep.subr.mxu0 0.0
  %152 = vmatpush1.msra.mxu0 %v38
  %153 = vmatprep.subr.mxu0 0.0
  %154 = vmatpush1.msra.mxu0 %v39
  %155 = vmatprep.subr.mxu0 0.0
  %156 = vmatpush1.msra.mxu0 %v40
  %157 = vmatprep.subr.mxu0 0.0
  %158 = vmatpush1.msra.mxu0 %v41
  %159 = vmatprep.subr.mxu0 0.0
  %160 = vmatpush1.msra.mxu0 %v42
  %161 = vmatprep.subr.mxu0 0.0
  %162 = vmatpush1.msra.mxu0 %v43
  %163 = vmatprep.subr.mxu0 0.0
  %164 = vmatpush1.msra.mxu0 %v44
  %165 = vmatprep.subr.mxu0 0.0
  %166 = vmatpush1.msra.mxu0 %v45
  %167 = vmatprep.subr.mxu0 0.0
  %168 = vmatpush1.msra.mxu0 %v46
  %169 = vmatprep.subr.mxu0 0.0
  %170 = vmatpush1.msra.mxu0 %v47
  %171 = vmatprep.subr.mxu0 0.0
  %172 = vmatpush1.msra.mxu0 %v48
  %173 = vmatprep.subr.mxu0 0.0
  %174 = vmatpush1.msra.mxu0 %v49
  %175 = vmatprep.subr.mxu0 0.0
  %176 = vmatpush1.msra.mxu0 %v50
  %177 = vmatprep.subr.mxu0 0.0
  %178 = vmatpush1.msra.mxu0 %v51
  %179 = vmatprep.subr.mxu0 0.0
  %180 = vmatpush1.msra.mxu0 %v52
  %181 = vmatprep.subr.mxu0 0.0
  %182 = vmatpush1.msra.mxu0 %v53
  %183 = vmatprep.subr.mxu0 0.0
  %184 = vmatpush1.msra.mxu0 %v54
  %185 = vmatprep.subr.mxu0 0.0
  %186 = vmatpush1.msra.mxu0 %v55
  %187 = vmatprep.subr.mxu0 0.0
  %188 = vmatpush1.msra.mxu0 %v56
  %189 = vmatprep.subr.mxu0 0.0
  %190 = vmatpush1.msra.mxu0 %v57
  %191 = vmatprep.mubr.f32.mxu0 %v21
  %192 = vmatmul.mubr.f32.gmra.mrb[0].mxu0 %v20
  %v193 = vpop.f32.mrb[0].mxu0
  %v194 = vadd.f32 %v126, %v193
  %v195 = vpop.f32.mrb[0].mxu0
  %196 = vdwg.mxu0
  %197 = vmatprep.subr.mxu0 0.0
  %198 = vmatpush1.msra.mxu0 %v58
  %199 = vmatprep.subr.mxu0 0.0
  %200 = vmatpush1.msra.mxu0 %v59
  %201 = vmatprep.subr.mxu0 0.0
  %202 = vmatpush1.msra.mxu0 %v60
  %203 = vmatprep.subr.mxu0 0.0
  %204 = vmatpush1.msra.mxu0 %v61
  %205 = vmatprep.subr.mxu0 0.0
  %206 = vmatpush1.msra.mxu0 %v62
  %207 = vmatprep.subr.mxu0 0.0
  %208 = vmatpush1.msra.mxu0 %v63
  %209 = vmatprep.subr.mxu0 0.0
  %210 = vmatpush1.msra.mxu0 %v64
  %211 = vmatprep.subr.mxu0 0.0
  %212 = vmatpush1.msra.mxu0 %v65
  %213 = vmatprep.subr.mxu0 0.0
  %214 = vmatpush1.msra.mxu0 %v66
  %215 = vmatprep.subr.mxu0 0.0
  %216 = vmatpush1.msra.mxu0 %v67
  %217 = vmatprep.subr.mxu0 0.0
  %218 = vmatpush1.msra.mxu0 %v68
  %219 = vmatprep.subr.mxu0 0.0
  %220 = vmatpush1.msra.mxu0 %v69
  %221 = vmatprep.subr.mxu0 0.0
  %222 = vmatpush1.msra.mxu0 %v70
  %223 = vmatprep.subr.mxu0 0.0
  %224 = vmatpush1.msra.mxu0 %v71
  %225 = vmatprep.subr.mxu0 0.0
  %226 = vmatpush1.msra.mxu0 %v72
  %227 = vmatprep.subr.mxu0 0.0
  %228 = vmatpush1.msra.mxu0 %v73
  %229 = vmatprep.subr.mxu0 0.0
  %230 = vmatpush1.msra.mxu0 %v74
  %231 = vmatprep.subr.mxu0 0.0
  %232 = vmatpush1.msra.mxu0 %v75
  %233 = vmatprep.subr.mxu0 0.0
  %234 = vmatpush1.msra.mxu0 %v76
  %235 = vmatprep.subr.mxu0 0.0
  %236 = vmatpush1.msra.mxu0 %v77
  %237 = vmatprep.subr.mxu0 0.0
  %238 = vmatpush1.msra.mxu0 %v78
  %239 = vmatprep.subr.mxu0 0.0
  %240 = vmatpush1.msra.mxu0 %v79
  %241 = vmatprep.subr.mxu0 0.0
  %242 = vmatpush1.msra.mxu0 %v80
  %243 = vmatprep.subr.mxu0 0.0
  %244 = vmatpush1.msra.mxu0 %v81
  %245 = vmatprep.subr.mxu0 0.0
  %246 = vmatpush1.msra.mxu0 %v82
  %247 = vmatprep.subr.mxu0 0.0
  %248 = vmatpush1.msra.mxu0 %v83
  %249 = vmatprep.subr.mxu0 0.0
  %250 = vmatpush1.msra.mxu0 %v84
  %251 = vmatprep.subr.mxu0 0.0
  %252 = vmatpush1.msra.mxu0 %v85
  %253 = vmatprep.subr.mxu0 0.0
  %254 = vmatpush1.msra.mxu0 %v86
  %255 = vmatprep.subr.mxu0 0.0
  %256 = vmatpush1.msra.mxu0 %v87
  %257 = vmatprep.subr.mxu0 0.0
  %258 = vmatpush1.msra.mxu0 %v88
  %259 = vmatprep.subr.mxu0 0.0
  %260 = vmatpush1.msra.mxu0 %v89
  %261 = vmatprep.mubr.f32.mxu0 %v23
  %262 = vmatmul.mubr.f32.gmra.mrb[0].mxu0 %v22
  %v263 = vpop.f32.mrb[0].mxu0
  %v264 = vadd.f32 %v194, %v263
  %v265 = vpop.f32.mrb[0].mxu0
  %266 = vdwg.mxu0
  %267 = vmatprep.subr.mxu0 0.0
  %268 = vmatpush1.msra.mxu0 %v90
  %269 = vmatprep.subr.mxu0 0.0
  %270 = vmatpush1.msra.mxu0 %v91
  %271 = vmatprep.subr.mxu0 0.0
  %272 = vmatpush1.msra.mxu0 %v92
  %273 = vmatprep.subr.mxu0 0.0
  %274 = vmatpush1.msra.mxu0 %v93
  %275 = vmatprep.subr.mxu0 0.0
  %276 = vmatpush1.msra.mxu0 %v94
  %277 = vmatprep.subr.mxu0 0.0
  %278 = vmatpush1.msra.mxu0 %v95
  %279 = vmatprep.subr.mxu0 0.0
  %280 = vmatpush1.msra.mxu0 %v96
  %281 = vmatprep.subr.mxu0 0.0
  %282 = vmatpush1.msra.mxu0 %v97
  %283 = vmatprep.subr.mxu0 0.0
  %284 = vmatpush1.msra.mxu0 %v98
  %285 = vmatprep.subr.mxu0 0.0
  %286 = vmatpush1.msra.mxu0 %v99
  %287 = vmatprep.subr.mxu0 0.0
  %288 = vmatpush1.msra.mxu0 %v100
  %289 = vmatprep.subr.mxu0 0.0
  %290 = vmatpush1.msra.mxu0 %v101
  %291 = vmatprep.subr.mxu0 0.0
  %292 = vmatpush1.msra.mxu0 %v102
  %293 = vmatprep.subr.mxu0 0.0
  %294 = vmatpush1.msra.mxu0 %v103
  %295 = vmatprep.subr.mxu0 0.0
  %296 = vmatpush1.msra.mxu0 %v104
  %297 = vmatprep.subr.mxu0 0.0
  %298 = vmatpush1.msra.mxu0 %v105
  %299 = vmatprep.subr.mxu0 0.0
  %300 = vmatpush1.msra.mxu0 %v106
  %301 = vmatprep.subr.mxu0 0.0
  %302 = vmatpush1.msra.mxu0 %v107
  %303 = vmatprep.subr.mxu0 0.0
  %304 = vmatpush1.msra.mxu0 %v108
  %305 = vmatprep.subr.mxu0 0.0
  %306 = vmatpush1.msra.mxu0 %v109
  %307 = vmatprep.subr.mxu0 0.0
  %308 = vmatpush1.msra.mxu0 %v110
  %309 = vmatprep.subr.mxu0 0.0
  %310 = vmatpush1.msra.mxu0 %v111
  %311 = vmatprep.subr.mxu0 0.0
  %312 = vmatpush1.msra.mxu0 %v112
  %313 = vmatprep.subr.mxu0 0.0
  %314 = vmatpush1.msra.mxu0 %v113
  %315 = vmatprep.subr.mxu0 0.0
  %316 = vmatpush1.msra.mxu0 %v114
  %317 = vmatprep.subr.mxu0 0.0
  %318 = vmatpush1.msra.mxu0 %v115
  %319 = vmatprep.subr.mxu0 0.0
  %320 = vmatpush1.msra.mxu0 %v116
  %321 = vmatprep.subr.mxu0 0.0
  %322 = vmatpush1.msra.mxu0 %v117
  %323 = vmatprep.subr.mxu0 0.0
  %324 = vmatpush1.msra.mxu0 %v118
  %325 = vmatprep.subr.mxu0 0.0
  %326 = vmatpush1.msra.mxu0 %v119
  %327 = vmatprep.subr.mxu0 0.0
  %328 = vmatpush1.msra.mxu0 %v120
  %329 = vmatprep.subr.mxu0 0.0
  %330 = vmatpush1.msra.mxu0 %v121
  %331 = vmatprep.mubr.f32.mxu0 %v25
  %332 = vmatmul.mubr.f32.gmra.mrb[0].mxu0 %v24
  %v333 = vpop.f32.mrb[0].mxu0
  %v334 = vadd.f32 %v264, %v333
  %v335 = vpop.f32.mrb[0].mxu0
  %336 = vdwg.mxu0
  %v337 = vld [vmem:[%s3 + $0x300] sm:$0xff]
  %v338 = vld [vmem:[%s3 + $0x308] sm:$0xff]
  %v339 = vld [vmem:[%s3 + $0x310] sm:$0xff]
  %v340 = vld [vmem:[%s3 + $0x318] sm:$0xff]
  %v341 = vld [vmem:[%s3 + $0x320] sm:$0xff]
  %v342 = vld [vmem:[%s3 + $0x328] sm:$0xff]
  %v343 = vld [vmem:[%s3 + $0x330] sm:$0xff]
  %v344 = vld [vmem:[%s3 + $0x338] sm:$0xff]
  %v345 = vld [vmem:[%s3 + $0x3c8] sm:$0x1]
  %v346 = vlaneseq
  %v347 = vshrl.u32 %v346, 7
  %v348 = vsub.s32 0, %v347
  %v349 = vrot.slane %v345, %v348
  %vm350 = vcmask 523264
  %v352 = vsel %vm350, %v334, 0
  %354 = vmatprep.subr.mxu0 0.0
  %355 = vmatpush1.msra.mxu0 %v337
  %356 = vmatprep.subr.mxu0 0.0
  %357 = vmatpush1.msra.mxu0 %v338
  %358 = vmatprep.subr.mxu0 0.0
  %359 = vmatpush1.msra.mxu0 %v339
  %360 = vmatprep.subr.mxu0 0.0
  %361 = vmatpush1.msra.mxu0 %v340
  %362 = vmatprep.subr.mxu0 0.0
  %363 = vmatpush1.msra.mxu0 %v341
  %364 = vmatprep.subr.mxu0 0.0
  %365 = vmatpush1.msra.mxu0 %v342
  %366 = vmatprep.subr.mxu0 0.0
  %367 = vmatpush1.msra.mxu0 %v343
  %368 = vmatprep.subr.mxu0 0.0
  %369 = vmatpush1.msra.mxu0 %v344
  %370 = vmatprep.subr.mxu0 0.0
  %371 = vmatpush1.msra.mxu0 0.0
  %372 = vmatprep.subr.mxu0 0.0
  %373 = vmatpush1.msra.mxu0 0.0
  %374 = vmatprep.subr.mxu0 0.0
  %375 = vmatpush1.msra.mxu0 0.0
  %376 = vmatprep.subr.mxu0 0.0
  %377 = vmatpush1.msra.mxu0 0.0
  %378 = vmatprep.subr.mxu0 0.0
  %379 = vmatpush1.msra.mxu0 0.0
  %380 = vmatprep.subr.mxu0 0.0
  %381 = vmatpush1.msra.mxu0 0.0
  %382 = vmatprep.subr.mxu0 0.0
  %383 = vmatpush1.msra.mxu0 0.0
  %384 = vmatprep.subr.mxu0 0.0
  %385 = vmatpush1.msra.mxu0 0.0
  %386 = vmatprep.subr.mxu0 0.0
  %387 = vmatpush1.msra.mxu0 0.0
  %388 = vmatprep.subr.mxu0 0.0
  %389 = vmatpush1.msra.mxu0 0.0
  %390 = vmatprep.subr.mxu0 0.0
  %391 = vmatpush1.msra.mxu0 0.0
  %392 = vmatprep.subr.mxu0 0.0
  %393 = vmatpush1.msra.mxu0 0.0
  %394 = vmatprep.subr.mxu0 0.0
  %395 = vmatpush1.msra.mxu0 0.0
  %396 = vmatprep.subr.mxu0 0.0
  %397 = vmatpush1.msra.mxu0 0.0
  %398 = vmatprep.subr.mxu0 0.0
  %399 = vmatpush1.msra.mxu0 0.0
  %400 = vmatprep.subr.mxu0 0.0
  %401 = vmatpush1.msra.mxu0 0.0
  %402 = vmatprep.subr.mxu0 0.0
  %403 = vmatpush1.msra.mxu0 0.0
  %404 = vmatprep.subr.mxu0 0.0
  %405 = vmatpush1.msra.mxu0 0.0
  %406 = vmatprep.subr.mxu0 0.0
  %407 = vmatpush1.msra.mxu0 0.0
  %408 = vmatprep.subr.mxu0 0.0
  %409 = vmatpush1.msra.mxu0 0.0
  %410 = vmatprep.subr.mxu0 0.0
  %411 = vmatpush1.msra.mxu0 0.0
  %412 = vmatprep.subr.mxu0 0.0
  %413 = vmatpush1.msra.mxu0 0.0
  %414 = vmatprep.subr.mxu0 0.0
  %415 = vmatpush1.msra.mxu0 0.0
  %416 = vmatprep.subr.mxu0 0.0
  %417 = vmatpush1.msra.mxu0 0.0
  %418 = vmatprep.mubr.f32.mxu0 0.0
  %419 = vmatmul.mubr.f32.gmra.mrb[0].mxu0 %v352
  %v420 = vpop.f32.mrb[0].mxu0
  %v421 = vadd.f32 %v349, %v420
  %v422 = vpop.f32.mrb[0].mxu0
  %423 = vdwg.mxu0
  %v424 = vld [vmem:[%s1] sm:$0xff]
  %v425 = vld [vmem:[%s1 + $0x8] sm:$0xff]
  %v426 = vld [vmem:[%s1 + $0x10] sm:$0xff]
  %v427 = vld [vmem:[%s1 + $0x18] sm:$0xff]
  %v428 = vld [vmem:[%s1 + $0x20] sm:$0xff]
  %v429 = vld [vmem:[%s1 + $0x28] sm:$0xff]
  %v430 = vld [vmem:[%s1 + $0x30] sm:$0xff]
  %v431 = vld [vmem:[%s1 + $0x38] sm:$0xff]
  %v432 = vtanh.pop %v424
  %v433 = vtanh.pop %v425
  %v434 = vtanh.pop %v426
  %v435 = vtanh.pop %v427
  %v436 = vtanh.pop %v428
  %v437 = vtanh.pop %v429
  %v438 = vtanh.pop %v430
  %v439 = vtanh.pop %v431
  %s440 = scalar_lea.vmem %s2, 192
  %v441 = vld [vmem:[%s440] ss:$8 sm:$0x3]
  %v442 = vld [vmem:[%s2] sm:$0xff]
  %v443 = vld [vmem:[%s2 + $0x8] sm:$0xff]
  %v444 = vld [vmem:[%s2 + $0x10] sm:$0xff]
  %v445 = vld [vmem:[%s2 + $0x18] sm:$0xff]
  %v446 = vld [vmem:[%s2 + $0x20] sm:$0xff]
  %v447 = vld [vmem:[%s2 + $0x28] sm:$0xff]
  %v448 = vld [vmem:[%s2 + $0x30] sm:$0xff]
  %v449 = vld [vmem:[%s2 + $0x38] sm:$0xff]
  %v451 = vlaneseq
  %v452 = vshrl.u32 %v451, 7
  %v453 = vsub.s32 0, %v452
  %v454 = vrot.slane %v441, %v453
  %v455 = vlaneseq
  %v456 = vshrl.u32 %v455, 7
  %v457 = vsub.s32 1, %v456
  %v458 = vrot.slane %v441, %v457
  %vm461 = vcmask 261120
  %v463 = vsel %vm461, %v432, 0
  %v466 = vsel %vm461, %v433, 0
  %v469 = vsel %vm461, %v434, 0
  %v472 = vsel %vm461, %v435, 0
  %v475 = vsel %vm461, %v436, 0
  %v478 = vsel %vm461, %v437, 0
  %v481 = vsel %vm461, %v438, 0
  %v484 = vsel %vm461, %v439, 0
  %486 = vmatprep.subr.mxu0 %v443
  %487 = vmatpush1.msra.mxu0 %v442
  %488 = vmatprep.subr.mxu0 %v445
  %489 = vmatpush1.msra.mxu0 %v444
  %490 = vmatprep.subr.mxu0 %v447
  %491 = vmatpush1.msra.mxu0 %v446
  %492 = vmatprep.subr.mxu0 %v449
  %493 = vmatpush1.msra.mxu0 %v448
  %494 = vmatprep.subr.mxu0 0.0
  %495 = vmatpush1.msra.mxu0 0.0
  %496 = vmatprep.subr.mxu0 0.0
  %497 = vmatpush1.msra.mxu0 0.0
  %498 = vmatprep.subr.mxu0 0.0
  %499 = vmatpush1.msra.mxu0 0.0
  %500 = vmatprep.subr.mxu0 0.0
  %501 = vmatpush1.msra.mxu0 0.0
  %502 = vmatprep.subr.mxu0 0.0
  %503 = vmatpush1.msra.mxu0 0.0
  %504 = vmatprep.subr.mxu0 0.0
  %505 = vmatpush1.msra.mxu0 0.0
  %506 = vmatprep.subr.mxu0 0.0
  %507 = vmatpush1.msra.mxu0 0.0
  %508 = vmatprep.subr.mxu0 0.0
  %509 = vmatpush1.msra.mxu0 0.0
  %510 = vmatprep.subr.mxu0 0.0
  %511 = vmatpush1.msra.mxu0 0.0
  %512 = vmatprep.subr.mxu0 0.0
  %513 = vmatpush1.msra.mxu0 0.0
  %514 = vmatprep.subr.mxu0 0.0
  %515 = vmatpush1.msra.mxu0 0.0
  %516 = vmatprep.subr.mxu0 0.0
  %517 = vmatpush1.msra.mxu0 0.0
  %518 = vmatprep.subr.mxu0 0.0
  %519 = vmatpush1.msra.mxu0 0.0
  %520 = vmatprep.subr.mxu0 0.0
  %521 = vmatpush1.msra.mxu0 0.0
  %522 = vmatprep.subr.mxu0 0.0
  %523 = vmatpush1.msra.mxu0 0.0
  %524 = vmatprep.subr.mxu0 0.0
  %525 = vmatpush1.msra.mxu0 0.0
  %526 = vmatprep.subr.mxu0 0.0
  %527 = vmatpush1.msra.mxu0 0.0
  %528 = vmatprep.subr.mxu0 0.0
  %529 = vmatpush1.msra.mxu0 0.0
  %530 = vmatprep.subr.mxu0 0.0
  %531 = vmatpush1.msra.mxu0 0.0
  %532 = vmatprep.subr.mxu0 0.0
  %533 = vmatpush1.msra.mxu0 0.0
  %534 = vmatprep.subr.mxu0 0.0
  %535 = vmatpush1.msra.mxu0 0.0
  %536 = vmatprep.subr.mxu0 0.0
  %537 = vmatpush1.msra.mxu0 0.0
  %538 = vmatprep.subr.mxu0 0.0
  %539 = vmatpush1.msra.mxu0 0.0
  %540 = vmatprep.subr.mxu0 0.0
  %541 = vmatpush1.msra.mxu0 0.0
  %542 = vmatprep.subr.mxu0 0.0
  %543 = vmatpush1.msra.mxu0 0.0
  %544 = vmatprep.subr.mxu0 0.0
  %545 = vmatpush1.msra.mxu0 0.0
  %546 = vmatprep.subr.mxu0 0.0
  %547 = vmatpush1.msra.mxu0 0.0
  %548 = vmatprep.subr.mxu0 0.0
  %549 = vmatpush1.msra.mxu0 0.0
  %550 = vmatprep.mubr.f32.mxu0 0.0
  %551 = vmatmul.mubr.f32.gmra.mrb[0].mxu0 %v463
  %v552 = vpop.f32.mrb[0].mxu0
  %v553 = vadd.f32 %v454, %v552
  %v554 = vpop.f32.mrb[0].mxu0
  %v555 = vadd.f32 %v458, %v554
  %556 = vmatprep.mubr.f32.mxu0 0.0
  %557 = vmatmul.mubr.f32.gmra.mrb[0].mxu0 %v466
  %v558 = vpop.f32.mrb[0].mxu0
  %v559 = vadd.f32 %v454, %v558
  %v560 = vpop.f32.mrb[0].mxu0
  %v561 = vadd.f32 %v458, %v560
  %562 = vmatprep.mubr.f32.mxu0 0.0
  %563 = vmatmul.mubr.f32.gmra.mrb[0].mxu0 %v469
  %v564 = vpop.f32.mrb[0].mxu0
  %v565 = vadd.f32 %v454, %v564
  %v566 = vpop.f32.mrb[0].mxu0
  %v567 = vadd.f32 %v458, %v566
  %568 = vmatprep.mubr.f32.mxu0 0.0
  %569 = vmatmul.mubr.f32.gmra.mrb[0].mxu0 %v472
  %v570 = vpop.f32.mrb[0].mxu0
  %v571 = vadd.f32 %v454, %v570
  %v572 = vpop.f32.mrb[0].mxu0
  %v573 = vadd.f32 %v458, %v572
  %574 = vmatprep.mubr.f32.mxu0 0.0
  %575 = vmatmul.mubr.f32.gmra.mrb[0].mxu0 %v475
  %v576 = vpop.f32.mrb[0].mxu0
  %v577 = vadd.f32 %v454, %v576
  %v578 = vpop.f32.mrb[0].mxu0
  %v579 = vadd.f32 %v458, %v578
  %580 = vmatprep.mubr.f32.mxu0 0.0
  %581 = vmatmul.mubr.f32.gmra.mrb[0].mxu0 %v478
  %v582 = vpop.f32.mrb[0].mxu0
  %v583 = vadd.f32 %v454, %v582
  %v584 = vpop.f32.mrb[0].mxu0
  %v585 = vadd.f32 %v458, %v584
  %586 = vmatprep.mubr.f32.mxu0 0.0
  %587 = vmatmul.mubr.f32.gmra.mrb[0].mxu0 %v481
  %v588 = vpop.f32.mrb[0].mxu0
  %v589 = vadd.f32 %v454, %v588
  %v590 = vpop.f32.mrb[0].mxu0
  %v591 = vadd.f32 %v458, %v590
  %592 = vmatprep.mubr.f32.mxu0 0.0
  %593 = vmatmul.mubr.f32.gmra.mrb[0].mxu0 %v484
  %v594 = vpop.f32.mrb[0].mxu0
  %v595 = vadd.f32 %v454, %v594
  %v596 = vpop.f32.mrb[0].mxu0
  %v597 = vadd.f32 %v458, %v596
  %598 = vdwg.mxu0
  %v599 = vld [vmem:[%s2 + $0x40] sm:$0xff]
  %v600 = vld [vmem:[%s2 + $0x48] sm:$0xff]
  %v601 = vld [vmem:[%s2 + $0x50] sm:$0xff]
  %v602 = vld [vmem:[%s2 + $0x58] sm:$0xff]
  %v603 = vld [vmem:[%s2 + $0x60] sm:$0xff]
  %v604 = vld [vmem:[%s2 + $0x68] sm:$0xff]
  %v605 = vld [vmem:[%s2 + $0x70] sm:$0xff]
  %v606 = vld [vmem:[%s2 + $0x78] sm:$0xff]
  %v607 = vld [vmem:[%s2 + $0x80] sm:$0xff]
  %v608 = vld [vmem:[%s2 + $0x88] sm:$0xff]
  %v609 = vld [vmem:[%s2 + $0x90] sm:$0xff]
  %v610 = vld [vmem:[%s2 + $0x98] sm:$0xff]
  %v611 = vld [vmem:[%s2 + $0xa0] sm:$0xff]
  %v612 = vld [vmem:[%s2 + $0xa8] sm:$0xff]
  %v613 = vld [vmem:[%s2 + $0xb0] sm:$0xff]
  %v614 = vld [vmem:[%s2 + $0xb8] sm:$0xff]
  %v615 = vlaneseq
  %v616 = vand.u32 %v615, 127
  %vm617 = vcmp.lt.s32.totalorder %v616, 32
  %v618 = vsel %vm617, 1.0, 0.0
  %v619 = vsub.f32 1.0, %v618
  %v621 = vsel %vm350, 0.0, 0
  %623 = vmatprep.subr.mxu0 %v600
  %624 = vmatpush1.msra.mxu0 %v599
  %625 = vmatprep.subr.mxu0 %v602
  %626 = vmatpush1.msra.mxu0 %v601
  %627 = vmatprep.subr.mxu0 %v604
  %628 = vmatpush1.msra.mxu0 %v603
  %629 = vmatprep.subr.mxu0 %v606
  %630 = vmatpush1.msra.mxu0 %v605
  %631 = vmatprep.subr.mxu0 %v608
  %632 = vmatpush1.msra.mxu0 %v607
  %633 = vmatprep.subr.mxu0 %v610
  %634 = vmatpush1.msra.mxu0 %v609
  %635 = vmatprep.subr.mxu0 %v612
  %636 = vmatpush1.msra.mxu0 %v611
  %637 = vmatprep.subr.mxu0 %v614
  %638 = vmatpush1.msra.mxu0 %v613
  %639 = vmatprep.subr.mxu0 0.0
  %640 = vmatpush1.msra.mxu0 0.0
  %641 = vmatprep.subr.mxu0 0.0
  %642 = vmatpush1.msra.mxu0 0.0
  %643 = vmatprep.subr.mxu0 0.0
  %644 = vmatpush1.msra.mxu0 0.0
  %645 = vmatprep.subr.mxu0 0.0
  %646 = vmatpush1.msra.mxu0 0.0
  %647 = vmatprep.subr.mxu0 0.0
  %648 = vmatpush1.msra.mxu0 0.0
  %649 = vmatprep.subr.mxu0 0.0
  %650 = vmatpush1.msra.mxu0 0.0
  %651 = vmatprep.subr.mxu0 0.0
  %652 = vmatpush1.msra.mxu0 0.0
  %653 = vmatprep.subr.mxu0 0.0
  %654 = vmatpush1.msra.mxu0 0.0
  %655 = vmatprep.subr.mxu0 0.0
  %656 = vmatpush1.msra.mxu0 0.0
  %657 = vmatprep.subr.mxu0 0.0
  %658 = vmatpush1.msra.mxu0 0.0
  %659 = vmatprep.subr.mxu0 0.0
  %660 = vmatpush1.msra.mxu0 0.0
  %661 = vmatprep.subr.mxu0 0.0
  %662 = vmatpush1.msra.mxu0 0.0
  %663 = vmatprep.subr.mxu0 0.0
  %664 = vmatpush1.msra.mxu0 0.0
  %665 = vmatprep.subr.mxu0 0.0
  %666 = vmatpush1.msra.mxu0 0.0
  %667 = vmatprep.subr.mxu0 0.0
  %668 = vmatpush1.msra.mxu0 0.0
  %669 = vmatprep.subr.mxu0 0.0
  %670 = vmatpush1.msra.mxu0 0.0
  %671 = vmatprep.subr.mxu0 0.0
  %672 = vmatpush1.msra.mxu0 0.0
  %673 = vmatprep.subr.mxu0 0.0
  %674 = vmatpush1.msra.mxu0 0.0
  %675 = vmatprep.subr.mxu0 0.0
  %676 = vmatpush1.msra.mxu0 0.0
  %677 = vmatprep.subr.mxu0 0.0
  %678 = vmatpush1.msra.mxu0 0.0
  %679 = vmatprep.subr.mxu0 0.0
  %680 = vmatpush1.msra.mxu0 0.0
  %681 = vmatprep.subr.mxu0 0.0
  %682 = vmatpush1.msra.mxu0 0.0
  %683 = vmatprep.subr.mxu0 0.0
  %684 = vmatpush1.msra.mxu0 0.0
  %685 = vmatprep.subr.mxu0 0.0
  %686 = vmatpush1.msra.mxu0 0.0
  %687 = vmatprep.mubr.f32.mxu0 0.0
  %688 = vmatmul.mubr.f32.gmra.mrb[0].mxu0 %v621
  %v689 = vpop.f32.mrb[0].mxu0
  %v690 = vadd.f32 %v553, %v689
  %v691 = vpop.f32.mrb[0].mxu0
  %v692 = vadd.f32 %v555, %v691
  %693 = vdwg.mxu0
  %v694 = vtanh.pop %v690
  %v695 = vtanh.pop %v692
  %v696 = vmul.f32 %v694, 0.5
  %v697 = vadd.f32 %v696, 0.5
  %v698 = vmul.f32 %v695, 0.5
  %v699 = vadd.f32 %v698, 0.5
  %v700 = vmul.f32 %v697, 0.0
  %v701 = vmul.f32 %v697, %v695
  %703 = vrot.lane.b32.xlu0 %v701, 64
  %v704 = vpop.permute.xlu0 %703
  %v706 = vadd.f32 %v700, %v704
  %v707 = vtanh.pop %v706
  %v708 = vmul.f32 %v699, %v707
  %710 = vrot.lane.b32.xlu0 %v618, 64
  %v711 = vpop.permute.xlu0 %710
  %v713 = vmul.f32 %v706, %v711
  %v714 = vmul.f32 %v708, %v711
  %716 = vrot.lane.b32.xlu0 %v714, 64
  %v717 = vpop.permute.xlu0 %716
  %v718 = vsel %vm350, %v717, 0
  %720 = vmatprep.subr.mxu0 %v600
  %721 = vmatpush1.msra.mxu0 %v599
  %722 = vmatprep.subr.mxu0 %v602
  %723 = vmatpush1.msra.mxu0 %v601
  %724 = vmatprep.subr.mxu0 %v604
  %725 = vmatpush1.msra.mxu0 %v603
  %726 = vmatprep.subr.mxu0 %v606
  %727 = vmatpush1.msra.mxu0 %v605
  %728 = vmatprep.subr.mxu0 %v608
  %729 = vmatpush1.msra.mxu0 %v607
  %730 = vmatprep.subr.mxu0 %v610
  %731 = vmatpush1.msra.mxu0 %v609
  %732 = vmatprep.subr.mxu0 %v612
  %733 = vmatpush1.msra.mxu0 %v611
  %734 = vmatprep.subr.mxu0 %v614
  %735 = vmatpush1.msra.mxu0 %v613
  %736 = vmatprep.subr.mxu0 0.0
  %737 = vmatpush1.msra.mxu0 0.0
  %738 = vmatprep.subr.mxu0 0.0
  %739 = vmatpush1.msra.mxu0 0.0
  %740 = vmatprep.subr.mxu0 0.0
  %741 = vmatpush1.msra.mxu0 0.0
  %742 = vmatprep.subr.mxu0 0.0
  %743 = vmatpush1.msra.mxu0 0.0
  %744 = vmatprep.subr.mxu0 0.0
  %745 = vmatpush1.msra.mxu0 0.0
  %746 = vmatprep.subr.mxu0 0.0
  %747 = vmatpush1.msra.mxu0 0.0
  %748 = vmatprep.subr.mxu0 0.0
  %749 = vmatpush1.msra.mxu0 0.0
  %750 = vmatprep.subr.mxu0 0.0
  %751 = vmatpush1.msra.mxu0 0.0
  %752 = vmatprep.subr.mxu0 0.0
  %753 = vmatpush1.msra.mxu0 0.0
  %754 = vmatprep.subr.mxu0 0.0
  %755 = vmatpush1.msra.mxu0 0.0
  %756 = vmatprep.subr.mxu0 0.0
  %757 = vmatpush1.msra.mxu0 0.0
  %758 = vmatprep.subr.mxu0 0.0
  %759 = vmatpush1.msra.mxu0 0.0
  %760 = vmatprep.subr.mxu0 0.0
  %761 = vmatpush1.msra.mxu0 0.0
  %762 = vmatprep.subr.mxu0 0.0
  %763 = vmatpush1.msra.mxu0 0.0
  %764 = vmatprep.subr.mxu0 0.0
  %765 = vmatpush1.msra.mxu0 0.0
  %766 = vmatprep.subr.mxu0 0.0
  %767 = vmatpush1.msra.mxu0 0.0
  %768 = vmatprep.subr.mxu0 0.0
  %769 = vmatpush1.msra.mxu0 0.0
  %770 = vmatprep.subr.mxu0 0.0
  %771 = vmatpush1.msra.mxu0 0.0
  %772 = vmatprep.subr.mxu0 0.0
  %773 = vmatpush1.msra.mxu0 0.0
  %774 = vmatprep.subr.mxu0 0.0
  %775 = vmatpush1.msra.mxu0 0.0
  %776 = vmatprep.subr.mxu0 0.0
  %777 = vmatpush1.msra.mxu0 0.0
  %778 = vmatprep.subr.mxu0 0.0
  %779 = vmatpush1.msra.mxu0 0.0
  %780 = vmatprep.subr.mxu0 0.0
  %781 = vmatpush1.msra.mxu0 0.0
  %782 = vmatprep.subr.mxu0 0.0
  %783 = vmatpush1.msra.mxu0 0.0
  %784 = vmatprep.mubr.f32.mxu0 0.0
  %785 = vmatmul.mubr.f32.gmra.mrb[0].mxu0 %v718
  %v786 = vpop.f32.mrb[0].mxu0
  %v787 = vadd.f32 %v559, %v786
  %v788 = vpop.f32.mrb[0].mxu0
  %v789 = vadd.f32 %v561, %v788
  %790 = vdwg.mxu0
  %v791 = vtanh.pop %v787
  %v792 = vtanh.pop %v789
  %v793 = vmul.f32 %v791, 0.5
  %v794 = vadd.f32 %v793, 0.5
  %v795 = vmul.f32 %v792, 0.5
  %v796 = vadd.f32 %v795, 0.5
  %v797 = vmul.f32 %v794, %v713
  %v798 = vmul.f32 %v794, %v792
  %800 = vrot.lane.b32.xlu0 %v798, 64
  %v801 = vpop.permute.xlu0 %800
  %v803 = vadd.f32 %v797, %v801
  %v804 = vtanh.pop %v803
  %v805 = vmul.f32 %v796, %v804
  %807 = vrot.lane.b32.xlu0 %v805, 64
  %v808 = vpop.permute.xlu0 %807
  %v809 = vsel %vm350, %v808, 0
  %811 = vmatprep.subr.mxu0 %v600
  %812 = vmatpush1.msra.mxu0 %v599
  %813 = vmatprep.subr.mxu0 %v602
  %814 = vmatpush1.msra.mxu0 %v601
  %815 = vmatprep.subr.mxu0 %v604
  %816 = vmatpush1.msra.mxu0 %v603
  %817 = vmatprep.subr.mxu0 %v606
  %818 = vmatpush1.msra.mxu0 %v605
  %819 = vmatprep.subr.mxu0 %v608
  %820 = vmatpush1.msra.mxu0 %v607
  %821 = vmatprep.subr.mxu0 %v610
  %822 = vmatpush1.msra.mxu0 %v609
  %823 = vmatprep.subr.mxu0 %v612
  %824 = vmatpush1.msra.mxu0 %v611
  %825 = vmatprep.subr.mxu0 %v614
  %826 = vmatpush1.msra.mxu0 %v613
  %827 = vmatprep.subr.mxu0 0.0
  %828 = vmatpush1.msra.mxu0 0.0
  %829 = vmatprep.subr.mxu0 0.0
  %830 = vmatpush1.msra.mxu0 0.0
  %831 = vmatprep.subr.mxu0 0.0
  %832 = vmatpush1.msra.mxu0 0.0
  %833 = vmatprep.subr.mxu0 0.0
  %834 = vmatpush1.msra.mxu0 0.0
  %835 = vmatprep.subr.mxu0 0.0
  %836 = vmatpush1.msra.mxu0 0.0
  %837 = vmatprep.subr.mxu0 0.0
  %838 = vmatpush1.msra.mxu0 0.0
  %839 = vmatprep.subr.mxu0 0.0
  %840 = vmatpush1.msra.mxu0 0.0
  %841 = vmatprep.subr.mxu0 0.0
  %842 = vmatpush1.msra.mxu0 0.0
  %843 = vmatprep.subr.mxu0 0.0
  %844 = vmatpush1.msra.mxu0 0.0
  %845 = vmatprep.subr.mxu0 0.0
  %846 = vmatpush1.msra.mxu0 0.0
  %847 = vmatprep.subr.mxu0 0.0
  %848 = vmatpush1.msra.mxu0 0.0
  %849 = vmatprep.subr.mxu0 0.0
  %850 = vmatpush1.msra.mxu0 0.0
  %851 = vmatprep.subr.mxu0 0.0
  %852 = vmatpush1.msra.mxu0 0.0
  %853 = vmatprep.subr.mxu0 0.0
  %854 = vmatpush1.msra.mxu0 0.0
  %855 = vmatprep.subr.mxu0 0.0
  %856 = vmatpush1.msra.mxu0 0.0
  %857 = vmatprep.subr.mxu0 0.0
  %858 = vmatpush1.msra.mxu0 0.0
  %859 = vmatprep.subr.mxu0 0.0
  %860 = vmatpush1.msra.mxu0 0.0
  %861 = vmatprep.subr.mxu0 0.0
  %862 = vmatpush1.msra.mxu0 0.0
  %863 = vmatprep.subr.mxu0 0.0
  %864 = vmatpush1.msra.mxu0 0.0
  %865 = vmatprep.subr.mxu0 0.0
  %866 = vmatpush1.msra.mxu0 0.0
  %867 = vmatprep.subr.mxu0 0.0
  %868 = vmatpush1.msra.mxu0 0.0
  %869 = vmatprep.subr.mxu0 0.0
  %870 = vmatpush1.msra.mxu0 0.0
  %871 = vmatprep.subr.mxu0 0.0
  %872 = vmatpush1.msra.mxu0 0.0
  %873 = vmatprep.subr.mxu0 0.0
  %874 = vmatpush1.msra.mxu0 0.0
  %875 = vmatprep.mubr.f32.mxu0 0.0
  %876 = vmatmul.mubr.f32.gmra.mrb[0].mxu0 %v809
  %v877 = vpop.f32.mrb[0].mxu0
  %v878 = vadd.f32 %v565, %v877
  %v879 = vpop.f32.mrb[0].mxu0
  %v880 = vadd.f32 %v567, %v879
  %881 = vdwg.mxu0
  %v882 = vtanh.pop %v878
  %v883 = vtanh.pop %v880
  %v884 = vmul.f32 %v882, 0.5
  %v885 = vadd.f32 %v884, 0.5
  %v886 = vmul.f32 %v883, 0.5
  %v887 = vadd.f32 %v886, 0.5
  %v888 = vmul.f32 %v885, %v803
  %v889 = vmul.f32 %v885, %v883
  %891 = vrot.lane.b32.xlu0 %v889, 64
  %v892 = vpop.permute.xlu0 %891
  %v894 = vadd.f32 %v888, %v892
  %v895 = vtanh.pop %v894
  %v896 = vmul.f32 %v887, %v895
  %898 = vrot.lane.b32.xlu0 %v896, 64
  %v899 = vpop.permute.xlu0 %898
  %v900 = vsel %vm350, %v899, 0
  %902 = vmatprep.subr.mxu0 %v600
  %903 = vmatpush1.msra.mxu0 %v599
  %904 = vmatprep.subr.mxu0 %v602
  %905 = vmatpush1.msra.mxu0 %v601
  %906 = vmatprep.subr.mxu0 %v604
  %907 = vmatpush1.msra.mxu0 %v603
  %908 = vmatprep.subr.mxu0 %v606
  %909 = vmatpush1.msra.mxu0 %v605
  %910 = vmatprep.subr.mxu0 %v608
  %911 = vmatpush1.msra.mxu0 %v607
  %912 = vmatprep.subr.mxu0 %v610
  %913 = vmatpush1.msra.mxu0 %v609
  %914 = vmatprep.subr.mxu0 %v612
  %915 = vmatpush1.msra.mxu0 %v611
  %916 = vmatprep.subr.mxu0 %v614
  %917 = vmatpush1.msra.mxu0 %v613
  %918 = vmatprep.subr.mxu0 0.0
  %919 = vmatpush1.msra.mxu0 0.0
  %920 = vmatprep.subr.mxu0 0.0
  %921 = vmatpush1.msra.mxu0 0.0
  %922 = vmatprep.subr.mxu0 0.0
  %923 = vmatpush1.msra.mxu0 0.0
  %924 = vmatprep.subr.mxu0 0.0
  %925 = vmatpush1.msra.mxu0 0.0
  %926 = vmatprep.subr.mxu0 0.0
  %927 = vmatpush1.msra.mxu0 0.0
  %928 = vmatprep.subr.mxu0 0.0
  %929 = vmatpush1.msra.mxu0 0.0
  %930 = vmatprep.subr.mxu0 0.0
  %931 = vmatpush1.msra.mxu0 0.0
  %932 = vmatprep.subr.mxu0 0.0
  %933 = vmatpush1.msra.mxu0 0.0
  %934 = vmatprep.subr.mxu0 0.0
  %935 = vmatpush1.msra.mxu0 0.0
  %936 = vmatprep.subr.mxu0 0.0
  %937 = vmatpush1.msra.mxu0 0.0
  %938 = vmatprep.subr.mxu0 0.0
  %939 = vmatpush1.msra.mxu0 0.0
  %940 = vmatprep.subr.mxu0 0.0
  %941 = vmatpush1.msra.mxu0 0.0
  %942 = vmatprep.subr.mxu0 0.0
  %943 = vmatpush1.msra.mxu0 0.0
  %944 = vmatprep.subr.mxu0 0.0
  %945 = vmatpush1.msra.mxu0 0.0
  %946 = vmatprep.subr.mxu0 0.0
  %947 = vmatpush1.msra.mxu0 0.0
  %948 = vmatprep.subr.mxu0 0.0
  %949 = vmatpush1.msra.mxu0 0.0
  %950 = vmatprep.subr.mxu0 0.0
  %951 = vmatpush1.msra.mxu0 0.0
  %952 = vmatprep.subr.mxu0 0.0
  %953 = vmatpush1.msra.mxu0 0.0
  %954 = vmatprep.subr.mxu0 0.0
  %955 = vmatpush1.msra.mxu0 0.0
  %956 = vmatprep.subr.mxu0 0.0
  %957 = vmatpush1.msra.mxu0 0.0
  %958 = vmatprep.subr.mxu0 0.0
  %959 = vmatpush1.msra.mxu0 0.0
  %960 = vmatprep.subr.mxu0 0.0
  %961 = vmatpush1.msra.mxu0 0.0
  %962 = vmatprep.subr.mxu0 0.0
  %963 = vmatpush1.msra.mxu0 0.0
  %964 = vmatprep.subr.mxu0 0.0
  %965 = vmatpush1.msra.mxu0 0.0
  %966 = vmatprep.mubr.f32.mxu0 0.0
  %967 = vmatmul.mubr.f32.gmra.mrb[0].mxu0 %v900
  %v968 = vpop.f32.mrb[0].mxu0
  %v969 = vadd.f32 %v571, %v968
  %v970 = vpop.f32.mrb[0].mxu0
  %v971 = vadd.f32 %v573, %v970
  %972 = vdwg.mxu0
  %v973 = vtanh.pop %v969
  %v974 = vtanh.pop %v971
  %v975 = vmul.f32 %v973, 0.5
  %v976 = vadd.f32 %v975, 0.5
  %v977 = vmul.f32 %v974, 0.5
  %v978 = vadd.f32 %v977, 0.5
  %v979 = vmul.f32 %v976, %v894
  %v980 = vmul.f32 %v976, %v974
  %982 = vrot.lane.b32.xlu0 %v980, 64
  %v983 = vpop.permute.xlu0 %982
  %v985 = vadd.f32 %v979, %v983
  %v986 = vtanh.pop %v985
  %v987 = vmul.f32 %v978, %v986
  %989 = vrot.lane.b32.xlu0 %v987, 64
  %v990 = vpop.permute.xlu0 %989
  %v991 = vsel %vm350, %v990, 0
  %993 = vmatprep.subr.mxu0 %v600
  %994 = vmatpush1.msra.mxu0 %v599
  %995 = vmatprep.subr.mxu0 %v602
  %996 = vmatpush1.msra.mxu0 %v601
  %997 = vmatprep.subr.mxu0 %v604
  %998 = vmatpush1.msra.mxu0 %v603
  %999 = vmatprep.subr.mxu0 %v606
  %1000 = vmatpush1.msra.mxu0 %v605
  %1001 = vmatprep.subr.mxu0 %v608
  %1002 = vmatpush1.msra.mxu0 %v607
  %1003 = vmatprep.subr.mxu0 %v610
  %1004 = vmatpush1.msra.mxu0 %v609
  %1005 = vmatprep.subr.mxu0 %v612
  %1006 = vmatpush1.msra.mxu0 %v611
  %1007 = vmatprep.subr.mxu0 %v614
  %1008 = vmatpush1.msra.mxu0 %v613
  %1009 = vmatprep.subr.mxu0 0.0
  %1010 = vmatpush1.msra.mxu0 0.0
  %1011 = vmatprep.subr.mxu0 0.0
  %1012 = vmatpush1.msra.mxu0 0.0
  %1013 = vmatprep.subr.mxu0 0.0
  %1014 = vmatpush1.msra.mxu0 0.0
  %1015 = vmatprep.subr.mxu0 0.0
  %1016 = vmatpush1.msra.mxu0 0.0
  %1017 = vmatprep.subr.mxu0 0.0
  %1018 = vmatpush1.msra.mxu0 0.0
  %1019 = vmatprep.subr.mxu0 0.0
  %1020 = vmatpush1.msra.mxu0 0.0
  %1021 = vmatprep.subr.mxu0 0.0
  %1022 = vmatpush1.msra.mxu0 0.0
  %1023 = vmatprep.subr.mxu0 0.0
  %1024 = vmatpush1.msra.mxu0 0.0
  %1025 = vmatprep.subr.mxu0 0.0
  %1026 = vmatpush1.msra.mxu0 0.0
  %1027 = vmatprep.subr.mxu0 0.0
  %1028 = vmatpush1.msra.mxu0 0.0
  %1029 = vmatprep.subr.mxu0 0.0
  %1030 = vmatpush1.msra.mxu0 0.0
  %1031 = vmatprep.subr.mxu0 0.0
  %1032 = vmatpush1.msra.mxu0 0.0
  %1033 = vmatprep.subr.mxu0 0.0
  %1034 = vmatpush1.msra.mxu0 0.0
  %1035 = vmatprep.subr.mxu0 0.0
  %1036 = vmatpush1.msra.mxu0 0.0
  %1037 = vmatprep.subr.mxu0 0.0
  %1038 = vmatpush1.msra.mxu0 0.0
  %1039 = vmatprep.subr.mxu0 0.0
  %1040 = vmatpush1.msra.mxu0 0.0
  %1041 = vmatprep.subr.mxu0 0.0
  %1042 = vmatpush1.msra.mxu0 0.0
  %1043 = vmatprep.subr.mxu0 0.0
  %1044 = vmatpush1.msra.mxu0 0.0
  %1045 = vmatprep.subr.mxu0 0.0
  %1046 = vmatpush1.msra.mxu0 0.0
  %1047 = vmatprep.subr.mxu0 0.0
  %1048 = vmatpush1.msra.mxu0 0.0
  %1049 = vmatprep.subr.mxu0 0.0
  %1050 = vmatpush1.msra.mxu0 0.0
  %1051 = vmatprep.subr.mxu0 0.0
  %1052 = vmatpush1.msra.mxu0 0.0
  %1053 = vmatprep.subr.mxu0 0.0
  %1054 = vmatpush1.msra.mxu0 0.0
  %1055 = vmatprep.subr.mxu0 0.0
  %1056 = vmatpush1.msra.mxu0 0.0
  %1057 = vmatprep.mubr.f32.mxu0 0.0
  %1058 = vmatmul.mubr.f32.gmra.mrb[0].mxu0 %v991
  %v1059 = vpop.f32.mrb[0].mxu0
  %v1060 = vadd.f32 %v577, %v1059
  %v1061 = vpop.f32.mrb[0].mxu0
  %v1062 = vadd.f32 %v579, %v1061
  %1063 = vdwg.mxu0
  %v1064 = vtanh.pop %v1060
  %v1065 = vtanh.pop %v1062
  %v1066 = vmul.f32 %v1064, 0.5
  %v1067 = vadd.f32 %v1066, 0.5
  %v1068 = vmul.f32 %v1065, 0.5
  %v1069 = vadd.f32 %v1068, 0.5
  %v1070 = vmul.f32 %v1067, %v985
  %v1071 = vmul.f32 %v1067, %v1065
  %1073 = vrot.lane.b32.xlu0 %v1071, 64
  %v1074 = vpop.permute.xlu0 %1073
  %v1076 = vadd.f32 %v1070, %v1074
  %v1077 = vtanh.pop %v1076
  %v1078 = vmul.f32 %v1069, %v1077
  %1080 = vrot.lane.b32.xlu0 %v1078, 64
  %v1081 = vpop.permute.xlu0 %1080
  %v1082 = vsel %vm350, %v1081, 0
  %1084 = vmatprep.subr.mxu0 %v600
  %1085 = vmatpush1.msra.mxu0 %v599
  %1086 = vmatprep.subr.mxu0 %v602
  %1087 = vmatpush1.msra.mxu0 %v601
  %1088 = vmatprep.subr.mxu0 %v604
  %1089 = vmatpush1.msra.mxu0 %v603
  %1090 = vmatprep.subr.mxu0 %v606
  %1091 = vmatpush1.msra.mxu0 %v605
  %1092 = vmatprep.subr.mxu0 %v608
  %1093 = vmatpush1.msra.mxu0 %v607
  %1094 = vmatprep.subr.mxu0 %v610
  %1095 = vmatpush1.msra.mxu0 %v609
  %1096 = vmatprep.subr.mxu0 %v612
  %1097 = vmatpush1.msra.mxu0 %v611
  %1098 = vmatprep.subr.mxu0 %v614
  %1099 = vmatpush1.msra.mxu0 %v613
  %1100 = vmatprep.subr.mxu0 0.0
  %1101 = vmatpush1.msra.mxu0 0.0
  %1102 = vmatprep.subr.mxu0 0.0
  %1103 = vmatpush1.msra.mxu0 0.0
  %1104 = vmatprep.subr.mxu0 0.0
  %1105 = vmatpush1.msra.mxu0 0.0
  %1106 = vmatprep.subr.mxu0 0.0
  %1107 = vmatpush1.msra.mxu0 0.0
  %1108 = vmatprep.subr.mxu0 0.0
  %1109 = vmatpush1.msra.mxu0 0.0
  %1110 = vmatprep.subr.mxu0 0.0
  %1111 = vmatpush1.msra.mxu0 0.0
  %1112 = vmatprep.subr.mxu0 0.0
  %1113 = vmatpush1.msra.mxu0 0.0
  %1114 = vmatprep.subr.mxu0 0.0
  %1115 = vmatpush1.msra.mxu0 0.0
  %1116 = vmatprep.subr.mxu0 0.0
  %1117 = vmatpush1.msra.mxu0 0.0
  %1118 = vmatprep.subr.mxu0 0.0
  %1119 = vmatpush1.msra.mxu0 0.0
  %1120 = vmatprep.subr.mxu0 0.0
  %1121 = vmatpush1.msra.mxu0 0.0
  %1122 = vmatprep.subr.mxu0 0.0
  %1123 = vmatpush1.msra.mxu0 0.0
  %1124 = vmatprep.subr.mxu0 0.0
  %1125 = vmatpush1.msra.mxu0 0.0
  %1126 = vmatprep.subr.mxu0 0.0
  %1127 = vmatpush1.msra.mxu0 0.0
  %1128 = vmatprep.subr.mxu0 0.0
  %1129 = vmatpush1.msra.mxu0 0.0
  %1130 = vmatprep.subr.mxu0 0.0
  %1131 = vmatpush1.msra.mxu0 0.0
  %1132 = vmatprep.subr.mxu0 0.0
  %1133 = vmatpush1.msra.mxu0 0.0
  %1134 = vmatprep.subr.mxu0 0.0
  %1135 = vmatpush1.msra.mxu0 0.0
  %1136 = vmatprep.subr.mxu0 0.0
  %1137 = vmatpush1.msra.mxu0 0.0
  %1138 = vmatprep.subr.mxu0 0.0
  %1139 = vmatpush1.msra.mxu0 0.0
  %1140 = vmatprep.subr.mxu0 0.0
  %1141 = vmatpush1.msra.mxu0 0.0
  %1142 = vmatprep.subr.mxu0 0.0
  %1143 = vmatpush1.msra.mxu0 0.0
  %1144 = vmatprep.subr.mxu0 0.0
  %1145 = vmatpush1.msra.mxu0 0.0
  %1146 = vmatprep.subr.mxu0 0.0
  %1147 = vmatpush1.msra.mxu0 0.0
  %1148 = vmatprep.mubr.f32.mxu0 0.0
  %1149 = vmatmul.mubr.f32.gmra.mrb[0].mxu0 %v1082
  %v1150 = vpop.f32.mrb[0].mxu0
  %v1151 = vadd.f32 %v583, %v1150
  %v1152 = vpop.f32.mrb[0].mxu0
  %v1153 = vadd.f32 %v585, %v1152
  %1154 = vdwg.mxu0
  %v1155 = vtanh.pop %v1151
  %v1156 = vtanh.pop %v1153
  %v1157 = vmul.f32 %v1155, 0.5
  %v1158 = vadd.f32 %v1157, 0.5
  %v1159 = vmul.f32 %v1156, 0.5
  %v1160 = vadd.f32 %v1159, 0.5
  %v1161 = vmul.f32 %v1158, %v1076
  %v1162 = vmul.f32 %v1158, %v1156
  %1164 = vrot.lane.b32.xlu0 %v1162, 64
  %v1165 = vpop.permute.xlu0 %1164
  %v1167 = vadd.f32 %v1161, %v1165
  %v1168 = vtanh.pop %v1167
  %v1169 = vmul.f32 %v1160, %v1168
  %1171 = vrot.lane.b32.xlu0 %v1169, 64
  %v1172 = vpop.permute.xlu0 %1171
  %v1173 = vsel %vm350, %v1172, 0
  %1175 = vmatprep.subr.mxu0 %v600
  %1176 = vmatpush1.msra.mxu0 %v599
  %1177 = vmatprep.subr.mxu0 %v602
  %1178 = vmatpush1.msra.mxu0 %v601
  %1179 = vmatprep.subr.mxu0 %v604
  %1180 = vmatpush1.msra.mxu0 %v603
  %1181 = vmatprep.subr.mxu0 %v606
  %1182 = vmatpush1.msra.mxu0 %v605
  %1183 = vmatprep.subr.mxu0 %v608
  %1184 = vmatpush1.msra.mxu0 %v607
  %1185 = vmatprep.subr.mxu0 %v610
  %1186 = vmatpush1.msra.mxu0 %v609
  %1187 = vmatprep.subr.mxu0 %v612
  %1188 = vmatpush1.msra.mxu0 %v611
  %1189 = vmatprep.subr.mxu0 %v614
  %1190 = vmatpush1.msra.mxu0 %v613
  %1191 = vmatprep.subr.mxu0 0.0
  %1192 = vmatpush1.msra.mxu0 0.0
  %1193 = vmatprep.subr.mxu0 0.0
  %1194 = vmatpush1.msra.mxu0 0.0
  %1195 = vmatprep.subr.mxu0 0.0
  %1196 = vmatpush1.msra.mxu0 0.0
  %1197 = vmatprep.subr.mxu0 0.0
  %1198 = vmatpush1.msra.mxu0 0.0
  %1199 = vmatprep.subr.mxu0 0.0
  %1200 = vmatpush1.msra.mxu0 0.0
  %1201 = vmatprep.subr.mxu0 0.0
  %1202 = vmatpush1.msra.mxu0 0.0
  %1203 = vmatprep.subr.mxu0 0.0
  %1204 = vmatpush1.msra.mxu0 0.0
  %1205 = vmatprep.subr.mxu0 0.0
  %1206 = vmatpush1.msra.mxu0 0.0
  %1207 = vmatprep.subr.mxu0 0.0
  %1208 = vmatpush1.msra.mxu0 0.0
  %1209 = vmatprep.subr.mxu0 0.0
  %1210 = vmatpush1.msra.mxu0 0.0
  %1211 = vmatprep.subr.mxu0 0.0
  %1212 = vmatpush1.msra.mxu0 0.0
  %1213 = vmatprep.subr.mxu0 0.0
  %1214 = vmatpush1.msra.mxu0 0.0
  %1215 = vmatprep.subr.mxu0 0.0
  %1216 = vmatpush1.msra.mxu0 0.0
  %1217 = vmatprep.subr.mxu0 0.0
  %1218 = vmatpush1.msra.mxu0 0.0
  %1219 = vmatprep.subr.mxu0 0.0
  %1220 = vmatpush1.msra.mxu0 0.0
  %1221 = vmatprep.subr.mxu0 0.0
  %1222 = vmatpush1.msra.mxu0 0.0
  %1223 = vmatprep.subr.mxu0 0.0
  %1224 = vmatpush1.msra.mxu0 0.0
  %1225 = vmatprep.subr.mxu0 0.0
  %1226 = vmatpush1.msra.mxu0 0.0
  %1227 = vmatprep.subr.mxu0 0.0
  %1228 = vmatpush1.msra.mxu0 0.0
  %1229 = vmatprep.subr.mxu0 0.0
  %1230 = vmatpush1.msra.mxu0 0.0
  %1231 = vmatprep.subr.mxu0 0.0
  %1232 = vmatpush1.msra.mxu0 0.0
  %1233 = vmatprep.subr.mxu0 0.0
  %1234 = vmatpush1.msra.mxu0 0.0
  %1235 = vmatprep.subr.mxu0 0.0
  %1236 = vmatpush1.msra.mxu0 0.0
  %1237 = vmatprep.subr.mxu0 0.0
  %1238 = vmatpush1.msra.mxu0 0.0
  %1239 = vmatprep.mubr.f32.mxu0 0.0
  %1240 = vmatmul.mubr.f32.gmra.mrb[0].mxu0 %v1173
  %v1241 = vpop.f32.mrb[0].mxu0
  %v1242 = vadd.f32 %v589, %v1241
  %v1243 = vpop.f32.mrb[0].mxu0
  %v1244 = vadd.f32 %v591, %v1243
  %1245 = vdwg.mxu0
  %v1246 = vtanh.pop %v1242
  %v1247 = vtanh.pop %v1244
  %v1248 = vmul.f32 %v1246, 0.5
  %v1249 = vadd.f32 %v1248, 0.5
  %v1250 = vmul.f32 %v1247, 0.5
  %v1251 = vadd.f32 %v1250, 0.5
  %v1252 = vmul.f32 %v1249, %v1167
  %v1253 = vmul.f32 %v1249, %v1247
  %1255 = vrot.lane.b32.xlu0 %v1253, 64
  %v1256 = vpop.permute.xlu0 %1255
  %v1258 = vadd.f32 %v1252, %v1256
  %v1259 = vtanh.pop %v1258
  %v1260 = vmul.f32 %v1251, %v1259
  %1262 = vrot.lane.b32.xlu0 %v1260, 64
  %v1263 = vpop.permute.xlu0 %1262
  %v1264 = vsel %vm350, %v1263, 0
  %1266 = vmatprep.subr.mxu0 %v600
  %1267 = vmatpush1.msra.mxu0 %v599
  %1268 = vmatprep.subr.mxu0 %v602
  %1269 = vmatpush1.msra.mxu0 %v601
  %1270 = vmatprep.subr.mxu0 %v604
  %1271 = vmatpush1.msra.mxu0 %v603
  %1272 = vmatprep.subr.mxu0 %v606
  %1273 = vmatpush1.msra.mxu0 %v605
  %1274 = vmatprep.subr.mxu0 %v608
  %1275 = vmatpush1.msra.mxu0 %v607
  %1276 = vmatprep.subr.mxu0 %v610
  %1277 = vmatpush1.msra.mxu0 %v609
  %1278 = vmatprep.subr.mxu0 %v612
  %1279 = vmatpush1.msra.mxu0 %v611
  %1280 = vmatprep.subr.mxu0 %v614
  %1281 = vmatpush1.msra.mxu0 %v613
  %1282 = vmatprep.subr.mxu0 0.0
  %1283 = vmatpush1.msra.mxu0 0.0
  %1284 = vmatprep.subr.mxu0 0.0
  %1285 = vmatpush1.msra.mxu0 0.0
  %1286 = vmatprep.subr.mxu0 0.0
  %1287 = vmatpush1.msra.mxu0 0.0
  %1288 = vmatprep.subr.mxu0 0.0
  %1289 = vmatpush1.msra.mxu0 0.0
  %1290 = vmatprep.subr.mxu0 0.0
  %1291 = vmatpush1.msra.mxu0 0.0
  %1292 = vmatprep.subr.mxu0 0.0
  %1293 = vmatpush1.msra.mxu0 0.0
  %1294 = vmatprep.subr.mxu0 0.0
  %1295 = vmatpush1.msra.mxu0 0.0
  %1296 = vmatprep.subr.mxu0 0.0
  %1297 = vmatpush1.msra.mxu0 0.0
  %1298 = vmatprep.subr.mxu0 0.0
  %1299 = vmatpush1.msra.mxu0 0.0
  %1300 = vmatprep.subr.mxu0 0.0
  %1301 = vmatpush1.msra.mxu0 0.0
  %1302 = vmatprep.subr.mxu0 0.0
  %1303 = vmatpush1.msra.mxu0 0.0
  %1304 = vmatprep.subr.mxu0 0.0
  %1305 = vmatpush1.msra.mxu0 0.0
  %1306 = vmatprep.subr.mxu0 0.0
  %1307 = vmatpush1.msra.mxu0 0.0
  %1308 = vmatprep.subr.mxu0 0.0
  %1309 = vmatpush1.msra.mxu0 0.0
  %1310 = vmatprep.subr.mxu0 0.0
  %1311 = vmatpush1.msra.mxu0 0.0
  %1312 = vmatprep.subr.mxu0 0.0
  %1313 = vmatpush1.msra.mxu0 0.0
  %1314 = vmatprep.subr.mxu0 0.0
  %1315 = vmatpush1.msra.mxu0 0.0
  %1316 = vmatprep.subr.mxu0 0.0
  %1317 = vmatpush1.msra.mxu0 0.0
  %1318 = vmatprep.subr.mxu0 0.0
  %1319 = vmatpush1.msra.mxu0 0.0
  %1320 = vmatprep.subr.mxu0 0.0
  %1321 = vmatpush1.msra.mxu0 0.0
  %1322 = vmatprep.subr.mxu0 0.0
  %1323 = vmatpush1.msra.mxu0 0.0
  %1324 = vmatprep.subr.mxu0 0.0
  %1325 = vmatpush1.msra.mxu0 0.0
  %1326 = vmatprep.subr.mxu0 0.0
  %1327 = vmatpush1.msra.mxu0 0.0
  %1328 = vmatprep.subr.mxu0 0.0
  %1329 = vmatpush1.msra.mxu0 0.0
  %1330 = vmatprep.mubr.f32.mxu0 0.0
  %1331 = vmatmul.mubr.f32.gmra.mrb[0].mxu0 %v1264
  %v1332 = vpop.f32.mrb[0].mxu0
  %v1333 = vadd.f32 %v595, %v1332
  %v1334 = vpop.f32.mrb[0].mxu0
  %v1335 = vadd.f32 %v597, %v1334
  %1336 = vdwg.mxu0
  %v1337 = vtanh.pop %v1333
  %v1338 = vtanh.pop %v1335
  %v1339 = vmul.f32 %v1337, 0.5
  %v1340 = vadd.f32 %v1339, 0.5
  %v1341 = vmul.f32 %v1338, 0.5
  %v1342 = vadd.f32 %v1341, 0.5
  %v1343 = vmul.f32 %v1340, %v1258
  %v1344 = vmul.f32 %v1340, %v1338
  %1346 = vrot.lane.b32.xlu0 %v1344, 64
  %v1347 = vpop.permute.xlu0 %1346
  %v1349 = vadd.f32 %v1343, %v1347
  %v1350 = vtanh.pop %v1349
  %v1351 = vmul.f32 %v1342, %v1350
  %1353 = vrot.lane.b32.xlu0 %v1351, 64
  %v1354 = vpop.permute.xlu0 %1353
  %v1355 = vsel %vm350, %v1354, 0
  %1357 = vmatprep.subr.mxu0 %v600
  %1358 = vmatpush1.msra.mxu0 %v599
  %1359 = vmatprep.subr.mxu0 %v602
  %1360 = vmatpush1.msra.mxu0 %v601
  %1361 = vmatprep.subr.mxu0 %v604
  %1362 = vmatpush1.msra.mxu0 %v603
  %1363 = vmatprep.subr.mxu0 %v606
  %1364 = vmatpush1.msra.mxu0 %v605
  %1365 = vmatprep.subr.mxu0 %v608
  %1366 = vmatpush1.msra.mxu0 %v607
  %1367 = vmatprep.subr.mxu0 %v610
  %1368 = vmatpush1.msra.mxu0 %v609
  %1369 = vmatprep.subr.mxu0 %v612
  %1370 = vmatpush1.msra.mxu0 %v611
  %1371 = vmatprep.subr.mxu0 %v614
  %1372 = vmatpush1.msra.mxu0 %v613
  %1373 = vmatprep.subr.mxu0 0.0
  %1374 = vmatpush1.msra.mxu0 0.0
  %1375 = vmatprep.subr.mxu0 0.0
  %1376 = vmatpush1.msra.mxu0 0.0
  %1377 = vmatprep.subr.mxu0 0.0
  %1378 = vmatpush1.msra.mxu0 0.0
  %1379 = vmatprep.subr.mxu0 0.0
  %1380 = vmatpush1.msra.mxu0 0.0
  %1381 = vmatprep.subr.mxu0 0.0
  %1382 = vmatpush1.msra.mxu0 0.0
  %1383 = vmatprep.subr.mxu0 0.0
  %1384 = vmatpush1.msra.mxu0 0.0
  %1385 = vmatprep.subr.mxu0 0.0
  %1386 = vmatpush1.msra.mxu0 0.0
  %1387 = vmatprep.subr.mxu0 0.0
  %1388 = vmatpush1.msra.mxu0 0.0
  %1389 = vmatprep.subr.mxu0 0.0
  %1390 = vmatpush1.msra.mxu0 0.0
  %1391 = vmatprep.subr.mxu0 0.0
  %1392 = vmatpush1.msra.mxu0 0.0
  %1393 = vmatprep.subr.mxu0 0.0
  %1394 = vmatpush1.msra.mxu0 0.0
  %1395 = vmatprep.subr.mxu0 0.0
  %1396 = vmatpush1.msra.mxu0 0.0
  %1397 = vmatprep.subr.mxu0 0.0
  %1398 = vmatpush1.msra.mxu0 0.0
  %1399 = vmatprep.subr.mxu0 0.0
  %1400 = vmatpush1.msra.mxu0 0.0
  %1401 = vmatprep.subr.mxu0 0.0
  %1402 = vmatpush1.msra.mxu0 0.0
  %1403 = vmatprep.subr.mxu0 0.0
  %1404 = vmatpush1.msra.mxu0 0.0
  %1405 = vmatprep.subr.mxu0 0.0
  %1406 = vmatpush1.msra.mxu0 0.0
  %1407 = vmatprep.subr.mxu0 0.0
  %1408 = vmatpush1.msra.mxu0 0.0
  %1409 = vmatprep.subr.mxu0 0.0
  %1410 = vmatpush1.msra.mxu0 0.0
  %1411 = vmatprep.subr.mxu0 0.0
  %1412 = vmatpush1.msra.mxu0 0.0
  %1413 = vmatprep.subr.mxu0 0.0
  %1414 = vmatpush1.msra.mxu0 0.0
  %1415 = vmatprep.subr.mxu0 0.0
  %1416 = vmatpush1.msra.mxu0 0.0
  %1417 = vmatprep.subr.mxu0 0.0
  %1418 = vmatpush1.msra.mxu0 0.0
  %1419 = vmatprep.subr.mxu0 0.0
  %1420 = vmatpush1.msra.mxu0 0.0
  %1421 = vmatprep.mubr.f32.mxu0 0.0
  %1422 = vmatmul.mubr.f32.gmra.mrb[0].mxu0 %v1355
  %v1423 = vpop.f32.mrb[0].mxu0
  %v1424 = vadd.f32 %v454, %v1423
  %v1425 = vpop.f32.mrb[0].mxu0
  %v1426 = vadd.f32 %v458, %v1425
  %1427 = vdwg.mxu0
  %v1428 = vtanh.pop %v1424
  %v1429 = vtanh.pop %v1426
  %v1430 = vmul.f32 %v1428, 0.5
  %v1431 = vadd.f32 %v1430, 0.5
  %v1432 = vmul.f32 %v1429, 0.5
  %v1433 = vadd.f32 %v1432, 0.5
  %v1434 = vmul.f32 %v1431, %v1349
  %v1435 = vmul.f32 %v1431, %v1429
  %1437 = vrot.lane.b32.xlu0 %v1435, 64
  %v1438 = vpop.permute.xlu0 %1437
  %v1440 = vadd.f32 %v1434, %v1438
  %v1441 = vtanh.pop %v1440
  %v1442 = vmul.f32 %v1433, %v1441
  %v1443 = vmul.f32 %v1349, %v711
  %1445 = vrot.lane.b32.xlu0 %v619, 64
  %v1446 = vpop.permute.xlu0 %1445
  %v1448 = vmul.f32 %v1440, %v1446
  %v1449 = vadd.f32 %v1443, %v1448
  %v1450 = vmul.f32 %v1351, %v711
  %v1451 = vmul.f32 %v1442, %v1446
  %v1452 = vadd.f32 %v1450, %v1451
  %v1453 = vtanh.pop %v1452
  %v1454 = vld [vmem:[%s3 + $0x340] sm:$0xff]
  %v1455 = vld [vmem:[%s3 + $0x348] sm:$0xff]
  %v1456 = vld [vmem:[%s3 + $0x350] sm:$0xff]
  %v1457 = vld [vmem:[%s3 + $0x358] sm:$0xff]
  %v1458 = vld [vmem:[%s3 + $0x360] sm:$0xff]
  %v1459 = vld [vmem:[%s3 + $0x368] sm:$0xff]
  %v1460 = vld [vmem:[%s3 + $0x370] sm:$0xff]
  %v1461 = vld [vmem:[%s3 + $0x378] sm:$0xff]
  %v1462 = vtanh.pop %v1449
  %v1463 = vld [vmem:[%s3 + $0x380] sm:$0xff]
  %v1464 = vld [vmem:[%s3 + $0x388] sm:$0xff]
  %v1465 = vld [vmem:[%s3 + $0x390] sm:$0xff]
  %v1466 = vld [vmem:[%s3 + $0x398] sm:$0xff]
  %v1467 = vld [vmem:[%s3 + $0x3a0] sm:$0xff]
  %v1468 = vld [vmem:[%s3 + $0x3a8] sm:$0xff]
  %v1469 = vld [vmem:[%s3 + $0x3b0] sm:$0xff]
  %v1470 = vld [vmem:[%s3 + $0x3b8] sm:$0xff]
  %1472 = vrot.lane.b32.xlu0 %v1462, 64
  %v1473 = vpop.permute.xlu0 %1472
  %v1474 = vsel %vm350, %v1473, 0
  %1476 = vmatprep.subr.mxu0 0.0
  %1477 = vmatpush1.msra.mxu0 %v1463
  %1478 = vmatprep.subr.mxu0 0.0
  %1479 = vmatpush1.msra.mxu0 %v1464
  %1480 = vmatprep.subr.mxu0 0.0
  %1481 = vmatpush1.msra.mxu0 %v1465
  %1482 = vmatprep.subr.mxu0 0.0
  %1483 = vmatpush1.msra.mxu0 %v1466
  %1484 = vmatprep.subr.mxu0 0.0
  %1485 = vmatpush1.msra.mxu0 %v1467
  %1486 = vmatprep.subr.mxu0 0.0
  %1487 = vmatpush1.msra.mxu0 %v1468
  %1488 = vmatprep.subr.mxu0 0.0
  %1489 = vmatpush1.msra.mxu0 %v1469
  %1490 = vmatprep.subr.mxu0 0.0
  %1491 = vmatpush1.msra.mxu0 %v1470
  %1492 = vmatprep.subr.mxu0 0.0
  %1493 = vmatpush1.msra.mxu0 0.0
  %1494 = vmatprep.subr.mxu0 0.0
  %1495 = vmatpush1.msra.mxu0 0.0
  %1496 = vmatprep.subr.mxu0 0.0
  %1497 = vmatpush1.msra.mxu0 0.0
  %1498 = vmatprep.subr.mxu0 0.0
  %1499 = vmatpush1.msra.mxu0 0.0
  %1500 = vmatprep.subr.mxu0 0.0
  %1501 = vmatpush1.msra.mxu0 0.0
  %1502 = vmatprep.subr.mxu0 0.0
  %1503 = vmatpush1.msra.mxu0 0.0
  %1504 = vmatprep.subr.mxu0 0.0
  %1505 = vmatpush1.msra.mxu0 0.0
  %1506 = vmatprep.subr.mxu0 0.0
  %1507 = vmatpush1.msra.mxu0 0.0
  %1508 = vmatprep.subr.mxu0 0.0
  %1509 = vmatpush1.msra.mxu0 0.0
  %1510 = vmatprep.subr.mxu0 0.0
  %1511 = vmatpush1.msra.mxu0 0.0
  %1512 = vmatprep.subr.mxu0 0.0
  %1513 = vmatpush1.msra.mxu0 0.0
  %1514 = vmatprep.subr.mxu0 0.0
  %1515 = vmatpush1.msra.mxu0 0.0
  %1516 = vmatprep.subr.mxu0 0.0
  %1517 = vmatpush1.msra.mxu0 0.0
  %1518 = vmatprep.subr.mxu0 0.0
  %1519 = vmatpush1.msra.mxu0 0.0
  %1520 = vmatprep.subr.mxu0 0.0
  %1521 = vmatpush1.msra.mxu0 0.0
  %1522 = vmatprep.subr.mxu0 0.0
  %1523 = vmatpush1.msra.mxu0 0.0
  %1524 = vmatprep.subr.mxu0 0.0
  %1525 = vmatpush1.msra.mxu0 0.0
  %1526 = vmatprep.subr.mxu0 0.0
  %1527 = vmatpush1.msra.mxu0 0.0
  %1528 = vmatprep.subr.mxu0 0.0
  %1529 = vmatpush1.msra.mxu0 0.0
  %1530 = vmatprep.subr.mxu0 0.0
  %1531 = vmatpush1.msra.mxu0 0.0
  %1532 = vmatprep.subr.mxu0 0.0
  %1533 = vmatpush1.msra.mxu0 0.0
  %1534 = vmatprep.subr.mxu0 0.0
  %1535 = vmatpush1.msra.mxu0 0.0
  %1536 = vmatprep.subr.mxu0 0.0
  %1537 = vmatpush1.msra.mxu0 0.0
  %1538 = vmatprep.subr.mxu0 0.0
  %1539 = vmatpush1.msra.mxu0 0.0
  %1540 = vmatprep.mubr.f32.mxu0 0.0
  %1541 = vmatmul.mubr.f32.gmra.mrb[0].mxu0 %v1474
  %v1542 = vpop.f32.mrb[0].mxu0
  %v1543 = vadd.f32 0.0, %v1542
  %v1544 = vpop.f32.mrb[0].mxu0
  %1545 = vdwg.mxu0
  %1547 = vrot.lane.b32.xlu0 %v1453, 64
  %v1548 = vpop.permute.xlu0 %1547
  %v1549 = vsel %vm350, %v1548, 0
  %1551 = vmatprep.subr.mxu0 0.0
  %1552 = vmatpush1.msra.mxu0 %v1454
  %1553 = vmatprep.subr.mxu0 0.0
  %1554 = vmatpush1.msra.mxu0 %v1455
  %1555 = vmatprep.subr.mxu0 0.0
  %1556 = vmatpush1.msra.mxu0 %v1456
  %1557 = vmatprep.subr.mxu0 0.0
  %1558 = vmatpush1.msra.mxu0 %v1457
  %1559 = vmatprep.subr.mxu0 0.0
  %1560 = vmatpush1.msra.mxu0 %v1458
  %1561 = vmatprep.subr.mxu0 0.0
  %1562 = vmatpush1.msra.mxu0 %v1459
  %1563 = vmatprep.subr.mxu0 0.0
  %1564 = vmatpush1.msra.mxu0 %v1460
  %1565 = vmatprep.subr.mxu0 0.0
  %1566 = vmatpush1.msra.mxu0 %v1461
  %1567 = vmatprep.subr.mxu0 0.0
  %1568 = vmatpush1.msra.mxu0 0.0
  %1569 = vmatprep.subr.mxu0 0.0
  %1570 = vmatpush1.msra.mxu0 0.0
  %1571 = vmatprep.subr.mxu0 0.0
  %1572 = vmatpush1.msra.mxu0 0.0
  %1573 = vmatprep.subr.mxu0 0.0
  %1574 = vmatpush1.msra.mxu0 0.0
  %1575 = vmatprep.subr.mxu0 0.0
  %1576 = vmatpush1.msra.mxu0 0.0
  %1577 = vmatprep.subr.mxu0 0.0
  %1578 = vmatpush1.msra.mxu0 0.0
  %1579 = vmatprep.subr.mxu0 0.0
  %1580 = vmatpush1.msra.mxu0 0.0
  %1581 = vmatprep.subr.mxu0 0.0
  %1582 = vmatpush1.msra.mxu0 0.0
  %1583 = vmatprep.subr.mxu0 0.0
  %1584 = vmatpush1.msra.mxu0 0.0
  %1585 = vmatprep.subr.mxu0 0.0
  %1586 = vmatpush1.msra.mxu0 0.0
  %1587 = vmatprep.subr.mxu0 0.0
  %1588 = vmatpush1.msra.mxu0 0.0
  %1589 = vmatprep.subr.mxu0 0.0
  %1590 = vmatpush1.msra.mxu0 0.0
  %1591 = vmatprep.subr.mxu0 0.0
  %1592 = vmatpush1.msra.mxu0 0.0
  %1593 = vmatprep.subr.mxu0 0.0
  %1594 = vmatpush1.msra.mxu0 0.0
  %1595 = vmatprep.subr.mxu0 0.0
  %1596 = vmatpush1.msra.mxu0 0.0
  %1597 = vmatprep.subr.mxu0 0.0
  %1598 = vmatpush1.msra.mxu0 0.0
  %1599 = vmatprep.subr.mxu0 0.0
  %1600 = vmatpush1.msra.mxu0 0.0
  %1601 = vmatprep.subr.mxu0 0.0
  %1602 = vmatpush1.msra.mxu0 0.0
  %1603 = vmatprep.subr.mxu0 0.0
  %1604 = vmatpush1.msra.mxu0 0.0
  %1605 = vmatprep.subr.mxu0 0.0
  %1606 = vmatpush1.msra.mxu0 0.0
  %1607 = vmatprep.subr.mxu0 0.0
  %1608 = vmatpush1.msra.mxu0 0.0
  %1609 = vmatprep.subr.mxu0 0.0
  %1610 = vmatpush1.msra.mxu0 0.0
  %1611 = vmatprep.subr.mxu0 0.0
  %1612 = vmatpush1.msra.mxu0 0.0
  %1613 = vmatprep.subr.mxu0 0.0
  %1614 = vmatpush1.msra.mxu0 0.0
  %1615 = vmatprep.mubr.f32.mxu0 0.0
  %1616 = vmatmul.mubr.f32.gmra.mrb[0].mxu0 %v1549
  %v1617 = vpop.f32.mrb[0].mxu0
  %v1618 = vadd.f32 %v1543, %v1617
  %v1619 = vpop.f32.mrb[0].mxu0
  %1620 = vdwg.mxu0
  %v1621 = vld [vmem:[%s3 + $0x3d0] sm:$0x1]
  %v1622 = vlaneseq
  %v1623 = vshrl.u32 %v1622, 7
  %v1624 = vsub.s32 0, %v1623
  %v1625 = vrot.slane %v1621, %v1624
  %v1626 = vadd.f32 %v1618, %v1625
  %v1627 = vmul.f32 %v421, %v1626
  %v1628 = vtanh.pop %v1627
  %v1629 = vld [vmem:[%s4] sm:$0xff]
  %v1630 = vld [vmem:[%s4 + $0x8] sm:$0xff]
  %v1631 = vld [vmem:[%s4 + $0x10] sm:$0xff]
  %v1632 = vld [vmem:[%s4 + $0x18] sm:$0xff]
  %v1633 = vld [vmem:[%s4 + $0x20] sm:$0xff]
  %v1634 = vld [vmem:[%s4 + $0x28] sm:$0xff]
  %v1635 = vld [vmem:[%s4 + $0x30] sm:$0xff]
  %v1636 = vld [vmem:[%s4 + $0x38] sm:$0xff]
  %v1637 = vld [vmem:[%s4 + $0xc0] sm:$0x1]
  %v1638 = vlaneseq
  %v1639 = vshrl.u32 %v1638, 7
  %v1640 = vsub.s32 0, %v1639
  %v1641 = vrot.slane %v1637, %v1640
  %v1643 = vsel %vm350, %v1628, 0
  %1645 = vmatprep.subr.mxu0 0.0
  %1646 = vmatpush1.msra.mxu0 %v1629
  %1647 = vmatprep.subr.mxu0 0.0
  %1648 = vmatpush1.msra.mxu0 %v1630
  %1649 = vmatprep.subr.mxu0 0.0
  %1650 = vmatpush1.msra.mxu0 %v1631
  %1651 = vmatprep.subr.mxu0 0.0
  %1652 = vmatpush1.msra.mxu0 %v1632
  %1653 = vmatprep.subr.mxu0 0.0
  %1654 = vmatpush1.msra.mxu0 %v1633
  %1655 = vmatprep.subr.mxu0 0.0
  %1656 = vmatpush1.msra.mxu0 %v1634
  %1657 = vmatprep.subr.mxu0 0.0
  %1658 = vmatpush1.msra.mxu0 %v1635
  %1659 = vmatprep.subr.mxu0 0.0
  %1660 = vmatpush1.msra.mxu0 %v1636
  %1661 = vmatprep.subr.mxu0 0.0
  %1662 = vmatpush1.msra.mxu0 0.0
  %1663 = vmatprep.subr.mxu0 0.0
  %1664 = vmatpush1.msra.mxu0 0.0
  %1665 = vmatprep.subr.mxu0 0.0
  %1666 = vmatpush1.msra.mxu0 0.0
  %1667 = vmatprep.subr.mxu0 0.0
  %1668 = vmatpush1.msra.mxu0 0.0
  %1669 = vmatprep.subr.mxu0 0.0
  %1670 = vmatpush1.msra.mxu0 0.0
  %1671 = vmatprep.subr.mxu0 0.0
  %1672 = vmatpush1.msra.mxu0 0.0
  %1673 = vmatprep.subr.mxu0 0.0
  %1674 = vmatpush1.msra.mxu0 0.0
  %1675 = vmatprep.subr.mxu0 0.0
  %1676 = vmatpush1.msra.mxu0 0.0
  %1677 = vmatprep.subr.mxu0 0.0
  %1678 = vmatpush1.msra.mxu0 0.0
  %1679 = vmatprep.subr.mxu0 0.0
  %1680 = vmatpush1.msra.mxu0 0.0
  %1681 = vmatprep.subr.mxu0 0.0
  %1682 = vmatpush1.msra.mxu0 0.0
  %1683 = vmatprep.subr.mxu0 0.0
  %1684 = vmatpush1.msra.mxu0 0.0
  %1685 = vmatprep.subr.mxu0 0.0
  %1686 = vmatpush1.msra.mxu0 0.0
  %1687 = vmatprep.subr.mxu0 0.0
  %1688 = vmatpush1.msra.mxu0 0.0
  %1689 = vmatprep.subr.mxu0 0.0
  %1690 = vmatpush1.msra.mxu0 0.0
  %1691 = vmatprep.subr.mxu0 0.0
  %1692 = vmatpush1.msra.mxu0 0.0
  %1693 = vmatprep.subr.mxu0 0.0
  %1694 = vmatpush1.msra.mxu0 0.0
  %1695 = vmatprep.subr.mxu0 0.0
  %1696 = vmatpush1.msra.mxu0 0.0
  %1697 = vmatprep.subr.mxu0 0.0
  %1698 = vmatpush1.msra.mxu0 0.0
  %1699 = vmatprep.subr.mxu0 0.0
  %1700 = vmatpush1.msra.mxu0 0.0
  %1701 = vmatprep.subr.mxu0 0.0
  %1702 = vmatpush1.msra.mxu0 0.0
  %1703 = vmatprep.subr.mxu0 0.0
  %1704 = vmatpush1.msra.mxu0 0.0
  %1705 = vmatprep.subr.mxu0 0.0
  %1706 = vmatpush1.msra.mxu0 0.0
  %1707 = vmatprep.subr.mxu0 0.0
  %1708 = vmatpush1.msra.mxu0 0.0
  %1709 = vmatprep.mubr.f32.mxu0 0.0
  %1710 = vmatmul.mubr.f32.gmra.mrb[0].mxu0 %v1643
  %v1711 = vpop.f32.mrb[0].mxu0
  %v1712 = vadd.f32 %v1641, %v1711
  %v1713 = vpop.f32.mrb[0].mxu0
  %1714 = vdwg.mxu0
  %v1715 = vtanh.pop %v1712
  %v1716 = vld [vmem:[%s4 + $0x40] sm:$0xff]
  %v1717 = vld [vmem:[%s4 + $0x48] sm:$0xff]
  %v1718 = vld [vmem:[%s4 + $0x50] sm:$0xff]
  %v1719 = vld [vmem:[%s4 + $0x58] sm:$0xff]
  %v1720 = vld [vmem:[%s4 + $0x60] sm:$0xff]
  %v1721 = vld [vmem:[%s4 + $0x68] sm:$0xff]
  %v1722 = vld [vmem:[%s4 + $0x70] sm:$0xff]
  %v1723 = vld [vmem:[%s4 + $0x78] sm:$0xff]
  %v1724 = vld [vmem:[%s4 + $0x80] sm:$0xff]
  %v1725 = vld [vmem:[%s4 + $0x88] sm:$0xff]
  %v1726 = vld [vmem:[%s4 + $0x90] sm:$0xff]
  %v1727 = vld [vmem:[%s4 + $0x98] sm:$0xff]
  %v1728 = vld [vmem:[%s4 + $0xa0] sm:$0xff]
  %v1729 = vld [vmem:[%s4 + $0xa8] sm:$0xff]
  %v1730 = vld [vmem:[%s4 + $0xb0] sm:$0xff]
  %v1731 = vld [vmem:[%s4 + $0xb8] sm:$0xff]
  %v1732 = vld [vmem:[%s4 + $0xc8] sm:$0x1]
  %v1733 = vlaneseq
  %v1734 = vshrl.u32 %v1733, 7
  %v1735 = vsub.s32 0, %v1734
  %v1736 = vrot.slane %v1732, %v1735
  %1737 = vmatprep.subr.mxu0 0.0
  %1738 = vmatpush1.msra.mxu0 %v1716
  %1739 = vmatprep.subr.mxu0 0.0
  %1740 = vmatpush1.msra.mxu0 %v1717
  %1741 = vmatprep.subr.mxu0 0.0
  %1742 = vmatpush1.msra.mxu0 %v1718
  %1743 = vmatprep.subr.mxu0 0.0
  %1744 = vmatpush1.msra.mxu0 %v1719
  %1745 = vmatprep.subr.mxu0 0.0
  %1746 = vmatpush1.msra.mxu0 %v1720
  %1747 = vmatprep.subr.mxu0 0.0
  %1748 = vmatpush1.msra.mxu0 %v1721
  %1749 = vmatprep.subr.mxu0 0.0
  %1750 = vmatpush1.msra.mxu0 %v1722
  %1751 = vmatprep.subr.mxu0 0.0
  %1752 = vmatpush1.msra.mxu0 %v1723
  %1753 = vmatprep.subr.mxu0 0.0
  %1754 = vmatpush1.msra.mxu0 %v1724
  %1755 = vmatprep.subr.mxu0 0.0
  %1756 = vmatpush1.msra.mxu0 %v1725
  %1757 = vmatprep.subr.mxu0 0.0
  %1758 = vmatpush1.msra.mxu0 %v1726
  %1759 = vmatprep.subr.mxu0 0.0
  %1760 = vmatpush1.msra.mxu0 %v1727
  %1761 = vmatprep.subr.mxu0 0.0
  %1762 = vmatpush1.msra.mxu0 %v1728
  %1763 = vmatprep.subr.mxu0 0.0
  %1764 = vmatpush1.msra.mxu0 %v1729
  %1765 = vmatprep.subr.mxu0 0.0
  %1766 = vmatpush1.msra.mxu0 %v1730
  %1767 = vmatprep.subr.mxu0 0.0
  %1768 = vmatpush1.msra.mxu0 %v1731
  %1769 = vmatprep.subr.mxu0 0.0
  %1770 = vmatpush1.msra.mxu0 0.0
  %1771 = vmatprep.subr.mxu0 0.0
  %1772 = vmatpush1.msra.mxu0 0.0
  %1773 = vmatprep.subr.mxu0 0.0
  %1774 = vmatpush1.msra.mxu0 0.0
  %1775 = vmatprep.subr.mxu0 0.0
  %1776 = vmatpush1.msra.mxu0 0.0
  %1777 = vmatprep.subr.mxu0 0.0
  %1778 = vmatpush1.msra.mxu0 0.0
  %1779 = vmatprep.subr.mxu0 0.0
  %1780 = vmatpush1.msra.mxu0 0.0
  %1781 = vmatprep.subr.mxu0 0.0
  %1782 = vmatpush1.msra.mxu0 0.0
  %1783 = vmatprep.subr.mxu0 0.0
  %1784 = vmatpush1.msra.mxu0 0.0
  %1785 = vmatprep.subr.mxu0 0.0
  %1786 = vmatpush1.msra.mxu0 0.0
  %1787 = vmatprep.subr.mxu0 0.0
  %1788 = vmatpush1.msra.mxu0 0.0
  %1789 = vmatprep.subr.mxu0 0.0
  %1790 = vmatpush1.msra.mxu0 0.0
  %1791 = vmatprep.subr.mxu0 0.0
  %1792 = vmatpush1.msra.mxu0 0.0
  %1793 = vmatprep.subr.mxu0 0.0
  %1794 = vmatpush1.msra.mxu0 0.0
  %1795 = vmatprep.subr.mxu0 0.0
  %1796 = vmatpush1.msra.mxu0 0.0
  %1797 = vmatprep.subr.mxu0 0.0
  %1798 = vmatpush1.msra.mxu0 0.0
  %1799 = vmatprep.subr.mxu0 0.0
  %1800 = vmatpush1.msra.mxu0 0.0
  %1801 = vmatprep.mubr.f32.mxu0 0.0
  %1802 = vmatmul.mubr.f32.gmra.mrb[0].mxu0 %v1715
  %v1803 = vpop.f32.mrb[0].mxu0
  %v1804 = vadd.f32 %v1736, %v1803
  %v1805 = vpop.f32.mrb[0].mxu0
  %1806 = vdwg.mxu0
  %1807 = vst [vmem:[%s5] sm:$0xff] %v1804
  // Predicated region
  $region22: #{vqa_forward.1} parent=0 // pred_check
    _
  $region23: #{vqa_forward.1} parent=0 // pred_check_branch
    %1809 = sbr.rel (0) target = $region25
  $region24: #{vqa_forward.1} parent=0 // pred_region
    _
  $region25: #{vqa_forward.1} parent=0 // pred_fallthru
    _
  // Predicated region
  $region26: #{vqa_forward.1} parent=0 // pred_check
    _
  $region27: #{vqa_forward.1} parent=0 // pred_check_branch
    %1811 = sbr.rel (0) target = $region29
  $region28: #{vqa_forward.1} parent=0 // pred_region
    _
  $region29: #{vqa_forward.1} parent=0 // pred_fallthru
    _

</llo_original>
